<compile_context>
chip_gen: v7x
topology: tpu7x:2x2x1
jax: 0.10.0
libtpu: 0.0.40
codegen_flags: <defaults>
</compile_context>

<pallas_src>
import math
import jax
import jax.numpy as jnp
from jax.experimental import pallas as pl
from jax.experimental.pallas import tpu as pltpu

# ---- small synthetic shapes consistent with the module's forward ----
B, S, D = 2, 8, 32        # batch, sequence (num patches), encoder_self_attention_dim
H = 4                     # encoder_self_attention_heads
DH = D // H               # head dim
MLP_DIM = 64              # encoder_self_attention_mlp_dim
EPS = 1e-6                # encoder_normalization_eps

N = B * S                 # rows for all row-wise ops
D3 = 3 * D                # fused qkv width
VEC_W = max(D3, MLP_DIM)  # packed bias/LN slab width (96)


def _layernorm(x, w, b, eps):
    # PyTorch LayerNorm: biased variance, eps inside the sqrt.  rsqrt -> EUP.
    mu = jnp.mean(x, axis=-1, keepdims=True)
    var = jnp.mean((x - mu) ** 2, axis=-1, keepdims=True)
    return (x - mu) * jax.lax.rsqrt(var + eps) * w + b


def encoder_block_kernel(x_ref, wbig_ref, w2_ref, vec_ref, o_ref):
    # ---- unpack inputs (all whole-array VMEM blocks) ----
    x = x_ref[...].astype(jnp.float32).reshape(N, D)        # (B,S,D) -> (N,D), layout no-op

    wbig = wbig_ref[...]                                     # (D, 3D + D + MLP_DIM)
    w_qkv = wbig[:, 0:D3]                                    # (D, 3D)
    w_o = wbig[:, D3:D3 + D]                                 # (D, D)
    w_1 = wbig[:, D3 + D:D3 + D + MLP_DIM]                   # (D, MLP_DIM)
    w_2 = w2_ref[...]                                        # (MLP_DIM, D)

    vec = vec_ref[...]                                       # (8, VEC_W)
    b_qkv = vec[0:1, 0:D3]
    b_o = vec[1:2, 0:D]
    ln1_w = vec[2:3, 0:D]
    ln1_b = vec[3:4, 0:D]
    b_1 = vec[4:5, 0:MLP_DIM]
    b_2 = vec[5:6, 0:D]
    ln2_w = vec[6:7, 0:D]
    ln2_b = vec[7:8, 0:D]

    # ---------------- multi-head self attention (unmasked) ----------------
    # fused QKV projection: one MXU pass instead of three
    qkv = jnp.dot(x, w_qkv, preferred_element_type=jnp.float32) + b_qkv     # (N, 3D)
    qkv3 = qkv.reshape(B, S, D3)                                            # (B, S, 3D)

    scale = 1.0 / math.sqrt(DH)
    attn = jnp.zeros((N, D), jnp.float32)
    for h in range(H):                               # static unroll over heads
        qh = qkv3[:, :, h * DH:(h + 1) * DH]                  # (B, S, DH)
        kh = qkv3[:, :, D + h * DH:D + (h + 1) * DH]          # (B, S, DH)
        vh = qkv3[:, :, 2 * D + h * DH:2 * D + (h + 1) * DH]  # (B, S, DH)

        s = jnp.einsum('bqd,bkd->bqk', qh, kh,
                       preferred_element_type=jnp.float32) * scale          # (B, S, S)
        s = s - jnp.max(s, axis=-1, keepdims=True)
        p = jnp.exp(s)
        p = p * pl.reciprocal(jnp.sum(p, axis=-1, keepdims=True), approx=True)
        ctx = jnp.einsum('bqk,bkd->bqd', p, vh,
                         preferred_element_type=jnp.float32)                # (B, S, DH)

        # accumulate the output projection per head -> no lane-axis concat
        attn = attn + jnp.dot(ctx.reshape(N, DH), w_o[h * DH:(h + 1) * DH, :],
                              preferred_element_type=jnp.float32)
    attn = attn + b_o

    # residual + attention_norm
    x1 = _layernorm(attn + x, ln1_w, ln1_b, EPS)

    # ---------------- MLP: Linear -> GELU -> (dropout) -> Linear ----------------
    hmid = jnp.dot(x1, w_1, preferred_element_type=jnp.float32) + b_1
    # TODO(synk): if the original MLP uses torch.nn.GELU() (exact erf form),
    # switch to the erf-based GELU; tanh approximation kept here for robust lowering.
    hmid = jax.nn.gelu(hmid, approximate=True)
    mlp_out = jnp.dot(hmid, w_2, preferred_element_type=jnp.float32) + b_2

    # residual + ffn_norm
    x2 = _layernorm(mlp_out + x1, ln2_w, ln2_b, EPS)

    o_ref[...] = x2.reshape(B, S, D).astype(o_ref.dtype)


def _pad_row(v, width):
    v = v.reshape(1, -1)
    return jnp.pad(v, ((0, 0), (0, width - v.shape[1])))


def cptr_encoder_block(x, params):
    # ---- pack parameters into 3 slabs (few DMAs instead of 17) ----
    w_qkv = jnp.concatenate([params["wq"], params["wk"], params["wv"]], axis=1)  # (D, 3D)
    w_big = jnp.concatenate([w_qkv, params["wo"], params["w1"]], axis=1)         # (D, 3D+D+MLP_DIM)
    w_2 = params["w2"]                                                           # (MLP_DIM, D)

    b_qkv = jnp.concatenate([params["bq"], params["bk"], params["bv"]], axis=1)  # (1, 3D)
    vecs = jnp.concatenate([
        _pad_row(b_qkv, VEC_W),
        _pad_row(params["bo"], VEC_W),
        _pad_row(params["ln1_w"], VEC_W),
        _pad_row(params["ln1_b"], VEC_W),
        _pad_row(params["b1"], VEC_W),
        _pad_row(params["b2"], VEC_W),
        _pad_row(params["ln2_w"], VEC_W),
        _pad_row(params["ln2_b"], VEC_W),
    ], axis=0)                                                                   # (8, VEC_W)

    return pl.pallas_call(
        encoder_block_kernel,
        out_shape=jax.ShapeDtypeStruct((B, S, D), x.dtype),
        grid=(1,),
        in_specs=[
            pl.BlockSpec((B, S, D), lambda i: (0, 0, 0)),
            pl.BlockSpec(w_big.shape, lambda i: (0, 0)),
            pl.BlockSpec(w_2.shape, lambda i: (0, 0)),
            pl.BlockSpec(vecs.shape, lambda i: (0, 0)),
        ],
        out_specs=pl.BlockSpec((B, S, D), lambda i: (0, 0, 0)),
        compiler_params=pltpu.CompilerParams(dimension_semantics=("arbitrary",)),
    )(x, w_big, w_2, vecs)


# ---------------- pure-JAX reference for correctness ----------------
def reference_block(x, p):
    def ln(y, w, b):
        mu = jnp.mean(y, axis=-1, keepdims=True)
        var = jnp.mean((y - mu) ** 2, axis=-1, keepdims=True)
        return (y - mu) / jnp.sqrt(var + EPS) * w[0] + b[0]

    q = x @ p["wq"] + p["bq"][0]
    k = x @ p["wk"] + p["bk"][0]
    v = x @ p["wv"] + p["bv"][0]
    qh = q.reshape(B, S, H, DH).transpose(0, 2, 1, 3)
    kh = k.reshape(B, S, H, DH).transpose(0, 2, 1, 3)
    vh = v.reshape(B, S, H, DH).transpose(0, 2, 1, 3)
    scores = jnp.einsum("bhqd,bhkd->bhqk", qh, kh) / math.sqrt(DH)
    w = jax.nn.softmax(scores, axis=-1)
    attn = jnp.einsum("bhqk,bhkd->bhqd", w, vh).transpose(0, 2, 1, 3).reshape(B, S, D)
    attn = attn @ p["wo"] + p["bo"][0]
    x1 = ln(attn + x, p["ln1_w"], p["ln1_b"])
    hmid = jax.nn.gelu(x1 @ p["w1"] + p["b1"][0], approximate=True)
    mlp_out = hmid @ p["w2"] + p["b2"][0]
    return ln(mlp_out + x1, p["ln2_w"], p["ln2_b"])


def make_params(key):
    ks = jax.random.split(key, 12)
    n = lambda k, shape, s=0.05: (jax.random.normal(k, shape, jnp.float32) * s)
    return {
        "wq": n(ks[0], (D, D)), "bq": n(ks[1], (1, D)),
        "wk": n(ks[2], (D, D)), "bk": n(ks[3], (1, D)),
        "wv": n(ks[4], (D, D)), "bv": n(ks[5], (1, D)),
        "wo": n(ks[6], (D, D)), "bo": n(ks[7], (1, D)),
        "ln1_w": jnp.ones((1, D), jnp.float32), "ln1_b": jnp.zeros((1, D), jnp.float32),
        "w1": n(ks[8], (D, MLP_DIM)), "b1": n(ks[9], (1, MLP_DIM)),
        "w2": n(ks[10], (MLP_DIM, D)), "b2": n(ks[11], (1, D)),
        "ln2_w": jnp.ones((1, D), jnp.float32), "ln2_b": jnp.zeros((1, D), jnp.float32),
    }


if __name__ == "__main__":
    key = jax.random.PRNGKey(0)
    kx, kp = jax.random.split(key)
    x = jax.random.normal(kx, (B, S, D), jnp.float32)
    params = make_params(kp)

    out = cptr_encoder_block(x, params)
    out = jax.block_until_ready(out)

    ref = reference_block(x, params)
    assert out.shape == (B, S, D)
    assert jnp.allclose(out, ref, atol=1e-2, rtol=1e-2), "mismatch vs JAX reference"

    print("KERNEL_OK")
</pallas_src>

<mosaic_0001>
module attributes {stable_mosaic.version = 11 : i64} {
  func.func @encoder_block_kernel(%arg0: i32, %arg1: memref<2x8x32xf32, #tpu.memory_space<vmem>>, %arg2: memref<32x192xf32, #tpu.memory_space<vmem>>, %arg3: memref<64x32xf32, #tpu.memory_space<vmem>>, %arg4: memref<8x96xf32, #tpu.memory_space<vmem>>, %arg5: memref<2x8x32xf32, #tpu.memory_space<vmem>>) attributes {dimension_semantics = [#tpu.dimension_semantics<arbitrary>], iteration_bounds = array<i64: 1>, scalar_prefetch = 0 : i64, scratch_operands = 0 : i64, tpu.core_type = #tpu.core_type<tc>, window_params = [{pipeline_mode = #tpu.pipeline_mode<synchronous>, transform_indices = @transform_0, window_bounds = array<i64: 2, 8, 32>}, {pipeline_mode = #tpu.pipeline_mode<synchronous>, transform_indices = @transform_1, window_bounds = array<i64: 32, 192>}, {pipeline_mode = #tpu.pipeline_mode<synchronous>, transform_indices = @transform_2, window_bounds = array<i64: 64, 32>}, {pipeline_mode = #tpu.pipeline_mode<synchronous>, transform_indices = @transform_3, window_bounds = array<i64: 8, 96>}, {pipeline_mode = #tpu.pipeline_mode<synchronous>, transform_indices = @transform_4, window_bounds = array<i64: 2, 8, 32>}]} {
    %c0 = arith.constant 0 : index
    %c0_0 = arith.constant 0 : index
    %c0_1 = arith.constant 0 : index
    %0 = vector.load %arg1[%c0, %c0_0, %c0_1] : memref<2x8x32xf32, #tpu.memory_space<vmem>>, vector<2x8x32xf32>
    %1 = vector.shape_cast %0 : vector<2x8x32xf32> to vector<16x32xf32>
    %c0_2 = arith.constant 0 : index
    %c0_3 = arith.constant 0 : index
    %2 = vector.load %arg2[%c0_2, %c0_3] : memref<32x192xf32, #tpu.memory_space<vmem>>, vector<32x192xf32>
    %3 = vector.extract_strided_slice %2 {offsets = [0, 0], sizes = [32, 96], strides = [1, 1]} : vector<32x192xf32> to vector<32x96xf32>
    %4 = vector.extract_strided_slice %2 {offsets = [0, 96], sizes = [32, 32], strides = [1, 1]} : vector<32x192xf32> to vector<32x32xf32>
    %5 = vector.extract_strided_slice %2 {offsets = [0, 128], sizes = [32, 64], strides = [1, 1]} : vector<32x192xf32> to vector<32x64xf32>
    %c0_4 = arith.constant 0 : index
    %c0_5 = arith.constant 0 : index
    %6 = vector.load %arg3[%c0_4, %c0_5] : memref<64x32xf32, #tpu.memory_space<vmem>>, vector<64x32xf32>
    %c0_6 = arith.constant 0 : index
    %c0_7 = arith.constant 0 : index
    %7 = vector.load %arg4[%c0_6, %c0_7] : memref<8x96xf32, #tpu.memory_space<vmem>>, vector<8x96xf32>
    %8 = vector.extract_strided_slice %7 {offsets = [0, 0], sizes = [1, 96], strides = [1, 1]} : vector<8x96xf32> to vector<1x96xf32>
    %9 = vector.extract_strided_slice %7 {offsets = [1, 0], sizes = [1, 32], strides = [1, 1]} : vector<8x96xf32> to vector<1x32xf32>
    %10 = vector.extract_strided_slice %7 {offsets = [2, 0], sizes = [1, 32], strides = [1, 1]} : vector<8x96xf32> to vector<1x32xf32>
    %11 = vector.extract_strided_slice %7 {offsets = [3, 0], sizes = [1, 32], strides = [1, 1]} : vector<8x96xf32> to vector<1x32xf32>
    %12 = vector.extract_strided_slice %7 {offsets = [4, 0], sizes = [1, 64], strides = [1, 1]} : vector<8x96xf32> to vector<1x64xf32>
    %13 = vector.extract_strided_slice %7 {offsets = [5, 0], sizes = [1, 32], strides = [1, 1]} : vector<8x96xf32> to vector<1x32xf32>
    %14 = vector.extract_strided_slice %7 {offsets = [6, 0], sizes = [1, 32], strides = [1, 1]} : vector<8x96xf32> to vector<1x32xf32>
    %15 = vector.extract_strided_slice %7 {offsets = [7, 0], sizes = [1, 32], strides = [1, 1]} : vector<8x96xf32> to vector<1x32xf32>
    %cst = arith.constant dense<0.000000e+00> : vector<16x96xf32>
    %16 = tpu.matmul %1, %3, %cst {dimension_numbers = #tpu.dot_dimension_numbers<[1], [0], [0], [1], [0, 0, 1, 1], [], []>} : vector<16x32xf32>, vector<32x96xf32>, vector<16x96xf32> -> vector<16x96xf32>
    %17 = vector.broadcast %8 : vector<1x96xf32> to vector<16x96xf32>
    %18 = arith.addf %16, %17 : vector<16x96xf32>
    %19 = vector.shape_cast %18 : vector<16x96xf32> to vector<2x8x96xf32>
    %cst_8 = arith.constant 0.000000e+00 : f32
    %20 = vector.broadcast %cst_8 : f32 to vector<16x32xf32>
    %21 = vector.extract_strided_slice %19 {offsets = [0, 0, 0], sizes = [2, 8, 8], strides = [1, 1, 1]} : vector<2x8x96xf32> to vector<2x8x8xf32>
    %22 = vector.extract_strided_slice %19 {offsets = [0, 0, 32], sizes = [2, 8, 8], strides = [1, 1, 1]} : vector<2x8x96xf32> to vector<2x8x8xf32>
    %23 = vector.extract_strided_slice %19 {offsets = [0, 0, 64], sizes = [2, 8, 8], strides = [1, 1, 1]} : vector<2x8x96xf32> to vector<2x8x8xf32>
    "tpu.trace_start"() <{level = 10 : i32, message = "bqd,bkd->bqk"}> : () -> ()
    %cst_9 = arith.constant dense<0.000000e+00> : vector<2x8x8xf32>
    %24 = tpu.matmul %21, %22, %cst_9 {dimension_numbers = #tpu.dot_dimension_numbers<[2], [2], [1], [1], [0, 0, 0, 1, 1, 1], [0], [0]>} : vector<2x8x8xf32>, vector<2x8x8xf32>, vector<2x8x8xf32> -> vector<2x8x8xf32>
    "tpu.trace_stop"() : () -> ()
    %cst_10 = arith.constant 0.353553385 : f32
    %25 = vector.broadcast %cst_10 : f32 to vector<2x8x8xf32>
    %26 = arith.mulf %24, %25 : vector<2x8x8xf32>
    %cst_11 = arith.constant dense<0xFF800000> : vector<2x8xf32>
    %27 = vector.multi_reduction <maximumf>, %26, %cst_11 [2] : vector<2x8x8xf32> to vector<2x8xf32>
    %28 = vector.shape_cast %27 : vector<2x8xf32> to vector<2x8x1xf32>
    %29 = vector.broadcast %28 : vector<2x8x1xf32> to vector<2x8x8xf32>
    %30 = arith.subf %26, %29 : vector<2x8x8xf32>
    %31 = math.exp %30 : vector<2x8x8xf32>
    %cst_12 = arith.constant dense<0.000000e+00> : vector<2x8xf32>
    %32 = vector.multi_reduction <add>, %31, %cst_12 [2] : vector<2x8x8xf32> to vector<2x8xf32>
    %33 = vector.shape_cast %32 : vector<2x8xf32> to vector<2x8x1xf32>
    %34 = tpu.reciprocal %33 {approx = true} : vector<2x8x1xf32> -> vector<2x8x1xf32>
    %35 = vector.broadcast %34 : vector<2x8x1xf32> to vector<2x8x8xf32>
    %36 = arith.mulf %31, %35 : vector<2x8x8xf32>
    "tpu.trace_start"() <{level = 10 : i32, message = "bqk,bkd->bqd"}> : () -> ()
    %cst_13 = arith.constant dense<0.000000e+00> : vector<2x8x8xf32>
    %37 = tpu.matmul %36, %23, %cst_13 {dimension_numbers = #tpu.dot_dimension_numbers<[2], [1], [1], [2], [0, 0, 0, 1, 1, 2], [0], [0]>} : vector<2x8x8xf32>, vector<2x8x8xf32>, vector<2x8x8xf32> -> vector<2x8x8xf32>
    "tpu.trace_stop"() : () -> ()
    %38 = vector.shape_cast %37 : vector<2x8x8xf32> to vector<16x8xf32>
    %39 = vector.extract_strided_slice %4 {offsets = [0, 0], sizes = [8, 32], strides = [1, 1]} : vector<32x32xf32> to vector<8x32xf32>
    %cst_14 = arith.constant dense<0.000000e+00> : vector<16x32xf32>
    %40 = tpu.matmul %38, %39, %cst_14 {dimension_numbers = #tpu.dot_dimension_numbers<[1], [0], [0], [1], [0, 0, 1, 1], [], []>} : vector<16x8xf32>, vector<8x32xf32>, vector<16x32xf32> -> vector<16x32xf32>
    %41 = arith.addf %20, %40 : vector<16x32xf32>
    %42 = vector.extract_strided_slice %19 {offsets = [0, 0, 8], sizes = [2, 8, 8], strides = [1, 1, 1]} : vector<2x8x96xf32> to vector<2x8x8xf32>
    %43 = vector.extract_strided_slice %19 {offsets = [0, 0, 40], sizes = [2, 8, 8], strides = [1, 1, 1]} : vector<2x8x96xf32> to vector<2x8x8xf32>
    %44 = vector.extract_strided_slice %19 {offsets = [0, 0, 72], sizes = [2, 8, 8], strides = [1, 1, 1]} : vector<2x8x96xf32> to vector<2x8x8xf32>
    "tpu.trace_start"() <{level = 10 : i32, message = "bqd,bkd->bqk"}> : () -> ()
    %cst_15 = arith.constant dense<0.000000e+00> : vector<2x8x8xf32>
    %45 = tpu.matmul %42, %43, %cst_15 {dimension_numbers = #tpu.dot_dimension_numbers<[2], [2], [1], [1], [0, 0, 0, 1, 1, 1], [0], [0]>} : vector<2x8x8xf32>, vector<2x8x8xf32>, vector<2x8x8xf32> -> vector<2x8x8xf32>
    "tpu.trace_stop"() : () -> ()
    %cst_16 = arith.constant 0.353553385 : f32
    %46 = vector.broadcast %cst_16 : f32 to vector<2x8x8xf32>
    %47 = arith.mulf %45, %46 : vector<2x8x8xf32>
    %cst_17 = arith.constant dense<0xFF800000> : vector<2x8xf32>
    %48 = vector.multi_reduction <maximumf>, %47, %cst_17 [2] : vector<2x8x8xf32> to vector<2x8xf32>
    %49 = vector.shape_cast %48 : vector<2x8xf32> to vector<2x8x1xf32>
    %50 = vector.broadcast %49 : vector<2x8x1xf32> to vector<2x8x8xf32>
    %51 = arith.subf %47, %50 : vector<2x8x8xf32>
    %52 = math.exp %51 : vector<2x8x8xf32>
    %cst_18 = arith.constant dense<0.000000e+00> : vector<2x8xf32>
    %53 = vector.multi_reduction <add>, %52, %cst_18 [2] : vector<2x8x8xf32> to vector<2x8xf32>
    %54 = vector.shape_cast %53 : vector<2x8xf32> to vector<2x8x1xf32>
    %55 = tpu.reciprocal %54 {approx = true} : vector<2x8x1xf32> -> vector<2x8x1xf32>
    %56 = vector.broadcast %55 : vector<2x8x1xf32> to vector<2x8x8xf32>
    %57 = arith.mulf %52, %56 : vector<2x8x8xf32>
    "tpu.trace_start"() <{level = 10 : i32, message = "bqk,bkd->bqd"}> : () -> ()
    %cst_19 = arith.constant dense<0.000000e+00> : vector<2x8x8xf32>
    %58 = tpu.matmul %57, %44, %cst_19 {dimension_numbers = #tpu.dot_dimension_numbers<[2], [1], [1], [2], [0, 0, 0, 1, 1, 2], [0], [0]>} : vector<2x8x8xf32>, vector<2x8x8xf32>, vector<2x8x8xf32> -> vector<2x8x8xf32>
    "tpu.trace_stop"() : () -> ()
    %59 = vector.shape_cast %58 : vector<2x8x8xf32> to vector<16x8xf32>
    %60 = vector.extract_strided_slice %4 {offsets = [8, 0], sizes = [8, 32], strides = [1, 1]} : vector<32x32xf32> to vector<8x32xf32>
    %cst_20 = arith.constant dense<0.000000e+00> : vector<16x32xf32>
    %61 = tpu.matmul %59, %60, %cst_20 {dimension_numbers = #tpu.dot_dimension_numbers<[1], [0], [0], [1], [0, 0, 1, 1], [], []>} : vector<16x8xf32>, vector<8x32xf32>, vector<16x32xf32> -> vector<16x32xf32>
    %62 = arith.addf %41, %61 : vector<16x32xf32>
    %63 = vector.extract_strided_slice %19 {offsets = [0, 0, 16], sizes = [2, 8, 8], strides = [1, 1, 1]} : vector<2x8x96xf32> to vector<2x8x8xf32>
    %64 = vector.extract_strided_slice %19 {offsets = [0, 0, 48], sizes = [2, 8, 8], strides = [1, 1, 1]} : vector<2x8x96xf32> to vector<2x8x8xf32>
    %65 = vector.extract_strided_slice %19 {offsets = [0, 0, 80], sizes = [2, 8, 8], strides = [1, 1, 1]} : vector<2x8x96xf32> to vector<2x8x8xf32>
    "tpu.trace_start"() <{level = 10 : i32, message = "bqd,bkd->bqk"}> : () -> ()
    %cst_21 = arith.constant dense<0.000000e+00> : vector<2x8x8xf32>
    %66 = tpu.matmul %63, %64, %cst_21 {dimension_numbers = #tpu.dot_dimension_numbers<[2], [2], [1], [1], [0, 0, 0, 1, 1, 1], [0], [0]>} : vector<2x8x8xf32>, vector<2x8x8xf32>, vector<2x8x8xf32> -> vector<2x8x8xf32>
    "tpu.trace_stop"() : () -> ()
    %cst_22 = arith.constant 0.353553385 : f32
    %67 = vector.broadcast %cst_22 : f32 to vector<2x8x8xf32>
    %68 = arith.mulf %66, %67 : vector<2x8x8xf32>
    %cst_23 = arith.constant dense<0xFF800000> : vector<2x8xf32>
    %69 = vector.multi_reduction <maximumf>, %68, %cst_23 [2] : vector<2x8x8xf32> to vector<2x8xf32>
    %70 = vector.shape_cast %69 : vector<2x8xf32> to vector<2x8x1xf32>
    %71 = vector.broadcast %70 : vector<2x8x1xf32> to vector<2x8x8xf32>
    %72 = arith.subf %68, %71 : vector<2x8x8xf32>
    %73 = math.exp %72 : vector<2x8x8xf32>
    %cst_24 = arith.constant dense<0.000000e+00> : vector<2x8xf32>
    %74 = vector.multi_reduction <add>, %73, %cst_24 [2] : vector<2x8x8xf32> to vector<2x8xf32>
    %75 = vector.shape_cast %74 : vector<2x8xf32> to vector<2x8x1xf32>
    %76 = tpu.reciprocal %75 {approx = true} : vector<2x8x1xf32> -> vector<2x8x1xf32>
    %77 = vector.broadcast %76 : vector<2x8x1xf32> to vector<2x8x8xf32>
    %78 = arith.mulf %73, %77 : vector<2x8x8xf32>
    "tpu.trace_start"() <{level = 10 : i32, message = "bqk,bkd->bqd"}> : () -> ()
    %cst_25 = arith.constant dense<0.000000e+00> : vector<2x8x8xf32>
    %79 = tpu.matmul %78, %65, %cst_25 {dimension_numbers = #tpu.dot_dimension_numbers<[2], [1], [1], [2], [0, 0, 0, 1, 1, 2], [0], [0]>} : vector<2x8x8xf32>, vector<2x8x8xf32>, vector<2x8x8xf32> -> vector<2x8x8xf32>
    "tpu.trace_stop"() : () -> ()
    %80 = vector.shape_cast %79 : vector<2x8x8xf32> to vector<16x8xf32>
    %81 = vector.extract_strided_slice %4 {offsets = [16, 0], sizes = [8, 32], strides = [1, 1]} : vector<32x32xf32> to vector<8x32xf32>
    %cst_26 = arith.constant dense<0.000000e+00> : vector<16x32xf32>
    %82 = tpu.matmul %80, %81, %cst_26 {dimension_numbers = #tpu.dot_dimension_numbers<[1], [0], [0], [1], [0, 0, 1, 1], [], []>} : vector<16x8xf32>, vector<8x32xf32>, vector<16x32xf32> -> vector<16x32xf32>
    %83 = arith.addf %62, %82 : vector<16x32xf32>
    %84 = vector.extract_strided_slice %19 {offsets = [0, 0, 24], sizes = [2, 8, 8], strides = [1, 1, 1]} : vector<2x8x96xf32> to vector<2x8x8xf32>
    %85 = vector.extract_strided_slice %19 {offsets = [0, 0, 56], sizes = [2, 8, 8], strides = [1, 1, 1]} : vector<2x8x96xf32> to vector<2x8x8xf32>
    %86 = vector.extract_strided_slice %19 {offsets = [0, 0, 88], sizes = [2, 8, 8], strides = [1, 1, 1]} : vector<2x8x96xf32> to vector<2x8x8xf32>
    "tpu.trace_start"() <{level = 10 : i32, message = "bqd,bkd->bqk"}> : () -> ()
    %cst_27 = arith.constant dense<0.000000e+00> : vector<2x8x8xf32>
    %87 = tpu.matmul %84, %85, %cst_27 {dimension_numbers = #tpu.dot_dimension_numbers<[2], [2], [1], [1], [0, 0, 0, 1, 1, 1], [0], [0]>} : vector<2x8x8xf32>, vector<2x8x8xf32>, vector<2x8x8xf32> -> vector<2x8x8xf32>
    "tpu.trace_stop"() : () -> ()
    %cst_28 = arith.constant 0.353553385 : f32
    %88 = vector.broadcast %cst_28 : f32 to vector<2x8x8xf32>
    %89 = arith.mulf %87, %88 : vector<2x8x8xf32>
    %cst_29 = arith.constant dense<0xFF800000> : vector<2x8xf32>
    %90 = vector.multi_reduction <maximumf>, %89, %cst_29 [2] : vector<2x8x8xf32> to vector<2x8xf32>
    %91 = vector.shape_cast %90 : vector<2x8xf32> to vector<2x8x1xf32>
    %92 = vector.broadcast %91 : vector<2x8x1xf32> to vector<2x8x8xf32>
    %93 = arith.subf %89, %92 : vector<2x8x8xf32>
    %94 = math.exp %93 : vector<2x8x8xf32>
    %cst_30 = arith.constant dense<0.000000e+00> : vector<2x8xf32>
    %95 = vector.multi_reduction <add>, %94, %cst_30 [2] : vector<2x8x8xf32> to vector<2x8xf32>
    %96 = vector.shape_cast %95 : vector<2x8xf32> to vector<2x8x1xf32>
    %97 = tpu.reciprocal %96 {approx = true} : vector<2x8x1xf32> -> vector<2x8x1xf32>
    %98 = vector.broadcast %97 : vector<2x8x1xf32> to vector<2x8x8xf32>
    %99 = arith.mulf %94, %98 : vector<2x8x8xf32>
    "tpu.trace_start"() <{level = 10 : i32, message = "bqk,bkd->bqd"}> : () -> ()
    %cst_31 = arith.constant dense<0.000000e+00> : vector<2x8x8xf32>
    %100 = tpu.matmul %99, %86, %cst_31 {dimension_numbers = #tpu.dot_dimension_numbers<[2], [1], [1], [2], [0, 0, 0, 1, 1, 2], [0], [0]>} : vector<2x8x8xf32>, vector<2x8x8xf32>, vector<2x8x8xf32> -> vector<2x8x8xf32>
    "tpu.trace_stop"() : () -> ()
    %101 = vector.shape_cast %100 : vector<2x8x8xf32> to vector<16x8xf32>
    %102 = vector.extract_strided_slice %4 {offsets = [24, 0], sizes = [8, 32], strides = [1, 1]} : vector<32x32xf32> to vector<8x32xf32>
    %cst_32 = arith.constant dense<0.000000e+00> : vector<16x32xf32>
    %103 = tpu.matmul %101, %102, %cst_32 {dimension_numbers = #tpu.dot_dimension_numbers<[1], [0], [0], [1], [0, 0, 1, 1], [], []>} : vector<16x8xf32>, vector<8x32xf32>, vector<16x32xf32> -> vector<16x32xf32>
    %104 = arith.addf %83, %103 : vector<16x32xf32>
    %105 = vector.broadcast %9 : vector<1x32xf32> to vector<16x32xf32>
    %106 = arith.addf %104, %105 : vector<16x32xf32>
    %107 = arith.addf %106, %1 : vector<16x32xf32>
    %cst_33 = arith.constant dense<0.000000e+00> : vector<16xf32>
    %108 = vector.multi_reduction <add>, %107, %cst_33 [1] : vector<16x32xf32> to vector<16xf32>
    %109 = vector.shape_cast %108 : vector<16xf32> to vector<16x1xf32>
    %cst_34 = arith.constant 3.200000e+01 : f32
    %110 = vector.broadcast %cst_34 : f32 to vector<16x1xf32>
    %111 = arith.divf %109, %110 : vector<16x1xf32>
    %112 = vector.broadcast %111 : vector<16x1xf32> to vector<16x32xf32>
    %113 = arith.subf %107, %112 : vector<16x32xf32>
    %114 = arith.mulf %113, %113 : vector<16x32xf32>
    %cst_35 = arith.constant dense<0.000000e+00> : vector<16xf32>
    %115 = vector.multi_reduction <add>, %114, %cst_35 [1] : vector<16x32xf32> to vector<16xf32>
    %116 = vector.shape_cast %115 : vector<16xf32> to vector<16x1xf32>
    %cst_36 = arith.constant 3.200000e+01 : f32
    %117 = vector.broadcast %cst_36 : f32 to vector<16x1xf32>
    %118 = arith.divf %116, %117 : vector<16x1xf32>
    %119 = vector.broadcast %111 : vector<16x1xf32> to vector<16x32xf32>
    %120 = arith.subf %107, %119 : vector<16x32xf32>
    %cst_37 = arith.constant 9.99999997E-7 : f32
    %121 = vector.broadcast %cst_37 : f32 to vector<16x1xf32>
    %122 = arith.addf %118, %121 : vector<16x1xf32>
    %123 = math.rsqrt %122 : vector<16x1xf32>
    %124 = vector.broadcast %123 : vector<16x1xf32> to vector<16x32xf32>
    %125 = arith.mulf %120, %124 : vector<16x32xf32>
    %126 = vector.broadcast %10 : vector<1x32xf32> to vector<16x32xf32>
    %127 = arith.mulf %125, %126 : vector<16x32xf32>
    %128 = vector.broadcast %11 : vector<1x32xf32> to vector<16x32xf32>
    %129 = arith.addf %127, %128 : vector<16x32xf32>
    %cst_38 = arith.constant dense<0.000000e+00> : vector<16x64xf32>
    %130 = tpu.matmul %129, %5, %cst_38 {dimension_numbers = #tpu.dot_dimension_numbers<[1], [0], [0], [1], [0, 0, 1, 1], [], []>} : vector<16x32xf32>, vector<32x64xf32>, vector<16x64xf32> -> vector<16x64xf32>
    %131 = vector.broadcast %12 : vector<1x64xf32> to vector<16x64xf32>
    %132 = arith.addf %130, %131 : vector<16x64xf32>
    %133 = arith.mulf %132, %132 : vector<16x64xf32>
    %134 = arith.mulf %132, %133 : vector<16x64xf32>
    %cst_39 = arith.constant 4.471500e-02 : f32
    %135 = vector.broadcast %cst_39 : f32 to vector<16x64xf32>
    %136 = arith.mulf %135, %134 : vector<16x64xf32>
    %137 = arith.addf %132, %136 : vector<16x64xf32>
    %cst_40 = arith.constant 0.797884583 : f32
    %138 = vector.broadcast %cst_40 : f32 to vector<16x64xf32>
    %139 = arith.mulf %138, %137 : vector<16x64xf32>
    %140 = math.tanh %139 : vector<16x64xf32>
    %cst_41 = arith.constant 1.000000e+00 : f32
    %141 = vector.broadcast %cst_41 : f32 to vector<16x64xf32>
    %142 = arith.addf %141, %140 : vector<16x64xf32>
    %cst_42 = arith.constant 5.000000e-01 : f32
    %143 = vector.broadcast %cst_42 : f32 to vector<16x64xf32>
    %144 = arith.mulf %143, %142 : vector<16x64xf32>
    %145 = arith.mulf %132, %144 : vector<16x64xf32>
    %cst_43 = arith.constant dense<0.000000e+00> : vector<16x32xf32>
    %146 = tpu.matmul %145, %6, %cst_43 {dimension_numbers = #tpu.dot_dimension_numbers<[1], [0], [0], [1], [0, 0, 1, 1], [], []>} : vector<16x64xf32>, vector<64x32xf32>, vector<16x32xf32> -> vector<16x32xf32>
    %147 = vector.broadcast %13 : vector<1x32xf32> to vector<16x32xf32>
    %148 = arith.addf %146, %147 : vector<16x32xf32>
    %149 = arith.addf %148, %129 : vector<16x32xf32>
    %cst_44 = arith.constant dense<0.000000e+00> : vector<16xf32>
    %150 = vector.multi_reduction <add>, %149, %cst_44 [1] : vector<16x32xf32> to vector<16xf32>
    %151 = vector.shape_cast %150 : vector<16xf32> to vector<16x1xf32>
    %cst_45 = arith.constant 3.200000e+01 : f32
    %152 = vector.broadcast %cst_45 : f32 to vector<16x1xf32>
    %153 = arith.divf %151, %152 : vector<16x1xf32>
    %154 = vector.broadcast %153 : vector<16x1xf32> to vector<16x32xf32>
    %155 = arith.subf %149, %154 : vector<16x32xf32>
    %156 = arith.mulf %155, %155 : vector<16x32xf32>
    %cst_46 = arith.constant dense<0.000000e+00> : vector<16xf32>
    %157 = vector.multi_reduction <add>, %156, %cst_46 [1] : vector<16x32xf32> to vector<16xf32>
    %158 = vector.shape_cast %157 : vector<16xf32> to vector<16x1xf32>
    %cst_47 = arith.constant 3.200000e+01 : f32
    %159 = vector.broadcast %cst_47 : f32 to vector<16x1xf32>
    %160 = arith.divf %158, %159 : vector<16x1xf32>
    %161 = vector.broadcast %153 : vector<16x1xf32> to vector<16x32xf32>
    %162 = arith.subf %149, %161 : vector<16x32xf32>
    %cst_48 = arith.constant 9.99999997E-7 : f32
    %163 = vector.broadcast %cst_48 : f32 to vector<16x1xf32>
    %164 = arith.addf %160, %163 : vector<16x1xf32>
    %165 = math.rsqrt %164 : vector<16x1xf32>
    %166 = vector.broadcast %165 : vector<16x1xf32> to vector<16x32xf32>
    %167 = arith.mulf %162, %166 : vector<16x32xf32>
    %168 = vector.broadcast %14 : vector<1x32xf32> to vector<16x32xf32>
    %169 = arith.mulf %167, %168 : vector<16x32xf32>
    %170 = vector.broadcast %15 : vector<1x32xf32> to vector<16x32xf32>
    %171 = arith.addf %169, %170 : vector<16x32xf32>
    %172 = vector.shape_cast %171 : vector<16x32xf32> to vector<2x8x32xf32>
    %c0_49 = arith.constant 0 : index
    %c0_50 = arith.constant 0 : index
    %c0_51 = arith.constant 0 : index
    %173 = vector.load %arg5[%c0_49, %c0_50, %c0_51] : memref<2x8x32xf32, #tpu.memory_space<vmem>>, vector<2x8x32xf32>
    tpu.vector_store %arg5[%c0_49, %c0_50, %c0_51], %172 {strides = array<i32>} : memref<2x8x32xf32, #tpu.memory_space<vmem>>, vector<2x8x32xf32>,
    return
  }
  func.func @transform_0(%arg0: i32) -> (i32, i32, i32) {
    %c0_i32 = arith.constant 0 : i32
    %c0_i32_0 = arith.constant 0 : i32
    %c0_i32_1 = arith.constant 0 : i32
    %c0_i32_2 = arith.constant 0 : i32
    return %c0_i32, %c0_i32_0, %c0_i32_1 : i32, i32, i32
  }
  func.func @transform_1(%arg0: i32) -> (i32, i32) {
    %c0_i32 = arith.constant 0 : i32
    %c0_i32_0 = arith.constant 0 : i32
    %c0_i32_1 = arith.constant 0 : i32
    return %c0_i32, %c0_i32_0 : i32, i32
  }
  func.func @transform_2(%arg0: i32) -> (i32, i32) {
    %c0_i32 = arith.constant 0 : i32
    %c0_i32_0 = arith.constant 0 : i32
    %c0_i32_1 = arith.constant 0 : i32
    return %c0_i32, %c0_i32_0 : i32, i32
  }
  func.func @transform_3(%arg0: i32) -> (i32, i32) {
    %c0_i32 = arith.constant 0 : i32
    %c0_i32_0 = arith.constant 0 : i32
    %c0_i32_1 = arith.constant 0 : i32
    return %c0_i32, %c0_i32_0 : i32, i32
  }
  func.func @transform_4(%arg0: i32) -> (i32, i32, i32) {
    %c0_i32 = arith.constant 0 : i32
    %c0_i32_0 = arith.constant 0 : i32
    %c0_i32_1 = arith.constant 0 : i32
    %c0_i32_2 = arith.constant 0 : i32
    return %c0_i32, %c0_i32_0, %c0_i32_1 : i32, i32, i32
  }
}

</mosaic_0001>

<llo_original>
// kernel: tpu_custom_call.1
$region0: #{tpu_custom_call.1}
  #allocation0 [shape = 'u32[]', space=smem, size = 0x4, offset = 0x4, fixed_abs, tag = 'smem constant byte address 0x4 - core index']
  #allocation1 [shape = 'u32[144,128]{1,0:T(1,128)}', space=vmem, size = 0x12000, scoped, tag = 'internal scratch']
  %s0 = inlined_call_operand.vmem [shape: f32[2,8,32], index: 0, kind: input, shape index: {}]
  %s1 = inlined_call_operand.vmem [shape: f32[32,192], index: 1, kind: input, shape index: {}]
  %s2 = inlined_call_operand.vmem [shape: f32[64,32], index: 2, kind: input, shape index: {}]
  %s3 = inlined_call_operand.vmem [shape: f32[8,96], index: 3, kind: input, shape index: {}]
  %s4 = inlined_call_operand.hbm [shape: f32[2,8,32], index: 4, kind: output, shape index: {}]
  %s5 = sld [smem:[#allocation0]]
  $region26: #{tpu_custom_call.1} parent=0
    _
  %s7 = ssub.s32 1, %s5
  %s8 = scalar_select 0, %s7, %s5
  $region1: #{tpu_custom_call.1} parent=0
    #allocation2 [shape = 'u8[8192]{0}', space=vmem, size = 0x2000, scoped, tag = 'output window, operand 0, single buffered']
    #allocation3 [shape = 's32[1]{0}', space=sflag, size = 0x4, scoped, tag = 'scoped memory for tpu_custom_call.1']
    %9 = vsyncpa [#allocation3], 0
    // Predicated region
    $region2: #{tpu_custom_call.1} parent=1 // pred_check
      _
    $region3: #{tpu_custom_call.1} parent=1 // pred_check_branch
      %11 = sbr.rel (0) target = $region5
    $region4: #{tpu_custom_call.1} parent=1 // pred_region
      _
    $region5: #{tpu_custom_call.1} parent=1 // pred_fallthru
      _
    // Predicated region
    $region6: #{tpu_custom_call.1} parent=1 // pred_check
      _
    $region7: #{tpu_custom_call.1} parent=1 // pred_check_branch
      %13 = sbr.rel (0) target = $region9
    $region8: #{tpu_custom_call.1} parent=1 // pred_region
      _
    $region9: #{tpu_custom_call.1} parent=1 // pred_fallthru
      _
    // Predicated region
    $region10: #{tpu_custom_call.1} parent=1 // pred_check
      _
    $region11: #{tpu_custom_call.1} parent=1 // pred_check_branch
      %15 = sbr.rel (0) target = $region13
    $region12: #{tpu_custom_call.1} parent=1 // pred_region
      _
    $region13: #{tpu_custom_call.1} parent=1 // pred_fallthru
      _
    // Predicated region
    $region14: #{tpu_custom_call.1} parent=1 // pred_check
      _
    $region15: #{tpu_custom_call.1} parent=1 // pred_check_branch
      %17 = sbr.rel (0) target = $region17
    $region16: #{tpu_custom_call.1} parent=1 // pred_region
      _
    $region17: #{tpu_custom_call.1} parent=1 // pred_fallthru
      _
    %v18 = vld [vmem:[%s0] sm:$0xff]
    %v19 = vld [vmem:[%s0 + $0x8] sm:$0xff]
    %v20 = vld [vmem:[%s1] sm:$0xff]
    %v21 = vld [vmem:[%s1 + $0x8] sm:$0xff]
    %v22 = vld [vmem:[%s1 + $0x10] sm:$0xff]
    %v23 = vld [vmem:[%s1 + $0x18] sm:$0xff]
    %v24 = vld [vmem:[%s1 + $0x20] sm:$0xff]
    %v25 = vld [vmem:[%s1 + $0x28] sm:$0xff]
    %v26 = vld [vmem:[%s1 + $0x30] sm:$0xff]
    %v27 = vld [vmem:[%s1 + $0x38] sm:$0xff]
    %v28 = vld [vmem:[%s2] sm:$0xff]
    %v29 = vld [vmem:[%s2 + $0x8] sm:$0xff]
    %v30 = vld [vmem:[%s2 + $0x10] sm:$0xff]
    %v31 = vld [vmem:[%s2 + $0x18] sm:$0xff]
    %v32 = vld [vmem:[%s2 + $0x20] sm:$0xff]
    %v33 = vld [vmem:[%s2 + $0x28] sm:$0xff]
    %v34 = vld [vmem:[%s2 + $0x30] sm:$0xff]
    %v35 = vld [vmem:[%s2 + $0x38] sm:$0xff]
    %v36 = vld [vmem:[%s3] sm:$0xff]
    %v37 = vlaneseq
    %v38 = vshrl.u32 %v37, 7
    %v39 = vsub.s32 0, %v38
    %v40 = vrot.slane %v36, %v39
    %vm41 = vcmask 261120
    %v43 = vsel %vm41, %v18, 0
    %v46 = vsel %vm41, %v19, 0
    %48 = vmatprep.subr.mxu0 0.0
    %49 = vmatpush1.msra.mxu0 %v20
    %50 = vmatprep.subr.mxu0 0.0
    %51 = vmatpush1.msra.mxu0 %v22
    %52 = vmatprep.subr.mxu0 0.0
    %53 = vmatpush1.msra.mxu0 %v24
    %54 = vmatprep.subr.mxu0 0.0
    %55 = vmatpush1.msra.mxu0 %v26
    %56 = vmatprep.subr.mxu0 0.0
    %57 = vmatpush1.msra.mxu0 0.0
    %58 = vmatprep.subr.mxu0 0.0
    %59 = vmatpush1.msra.mxu0 0.0
    %60 = vmatprep.subr.mxu0 0.0
    %61 = vmatpush1.msra.mxu0 0.0
    %62 = vmatprep.subr.mxu0 0.0
    %63 = vmatpush1.msra.mxu0 0.0
    %64 = vmatprep.subr.mxu0 0.0
    %65 = vmatpush1.msra.mxu0 0.0
    %66 = vmatprep.subr.mxu0 0.0
    %67 = vmatpush1.msra.mxu0 0.0
    %68 = vmatprep.subr.mxu0 0.0
    %69 = vmatpush1.msra.mxu0 0.0
    %70 = vmatprep.subr.mxu0 0.0
    %71 = vmatpush1.msra.mxu0 0.0
    %72 = vmatprep.subr.mxu0 0.0
    %73 = vmatpush1.msra.mxu0 0.0
    %74 = vmatprep.subr.mxu0 0.0
    %75 = vmatpush1.msra.mxu0 0.0
    %76 = vmatprep.subr.mxu0 0.0
    %77 = vmatpush1.msra.mxu0 0.0
    %78 = vmatprep.subr.mxu0 0.0
    %79 = vmatpush1.msra.mxu0 0.0
    %80 = vmatprep.subr.mxu0 0.0
    %81 = vmatpush1.msra.mxu0 0.0
    %82 = vmatprep.subr.mxu0 0.0
    %83 = vmatpush1.msra.mxu0 0.0
    %84 = vmatprep.subr.mxu0 0.0
    %85 = vmatpush1.msra.mxu0 0.0
    %86 = vmatprep.subr.mxu0 0.0
    %87 = vmatpush1.msra.mxu0 0.0
    %88 = vmatprep.subr.mxu0 0.0
    %89 = vmatpush1.msra.mxu0 0.0
    %90 = vmatprep.subr.mxu0 0.0
    %91 = vmatpush1.msra.mxu0 0.0
    %92 = vmatprep.subr.mxu0 0.0
    %93 = vmatpush1.msra.mxu0 0.0
    %94 = vmatprep.subr.mxu0 0.0
    %95 = vmatpush1.msra.mxu0 0.0
    %96 = vmatprep.subr.mxu0 0.0
    %97 = vmatpush1.msra.mxu0 0.0
    %98 = vmatprep.subr.mxu0 0.0
    %99 = vmatpush1.msra.mxu0 0.0
    %100 = vmatprep.subr.mxu0 0.0
    %101 = vmatpush1.msra.mxu0 0.0
    %102 = vmatprep.subr.mxu0 0.0
    %103 = vmatpush1.msra.mxu0 0.0
    %104 = vmatprep.subr.mxu0 0.0
    %105 = vmatpush1.msra.mxu0 0.0
    %106 = vmatprep.subr.mxu0 0.0
    %107 = vmatpush1.msra.mxu0 0.0
    %108 = vmatprep.subr.mxu0 0.0
    %109 = vmatpush1.msra.mxu0 0.0
    %110 = vmatprep.subr.mxu0 0.0
    %111 = vmatpush1.msra.mxu0 0.0
    %112 = vmatprep.mubr.f32.mxu0 0.0
    %113 = vmatmul.mubr.f32.gmra.mrb[0].mxu0 %v43
    %v114 = vpop.f32.mrb[0].mxu0
    %v115 = vadd.f32 %v40, %v114
    %v116 = vpop.f32.mrb[0].mxu0
    %117 = vmatprep.mubr.f32.mxu0 0.0
    %118 = vmatmul.mubr.f32.gmra.mrb[0].mxu0 %v46
    %v119 = vpop.f32.mrb[0].mxu0
    %v120 = vadd.f32 %v40, %v119
    %v121 = vpop.f32.mrb[0].mxu0
    %122 = vdwg.mxu0
    %124 = vrot.lane.b32.xlu0 %v115, 96
    %v125 = vpop.permute.xlu0 %124
    %vm126 = vcmask 64512
    %v127 = vsel %vm126, %v115, 0
    %v129 = vsel %vm126, %v125, 0
    %131 = vmatprep.subr.mxu0 0.0
    %132 = vmatpush1.xpose.msra.mxu0 %v129
    %133 = vmatprep.subr.mxu0 0.0
    %134 = vmatpush1.xpose.msra.mxu0 0.0
    %135 = vmatprep.subr.mxu0 0.0
    %136 = vmatpush1.xpose.msra.mxu0 0.0
    %137 = vmatprep.subr.mxu0 0.0
    %138 = vmatpush1.xpose.msra.mxu0 0.0
    %139 = vmatprep.subr.mxu0 0.0
    %140 = vmatpush1.xpose.msra.mxu0 0.0
    %141 = vmatprep.subr.mxu0 0.0
    %142 = vmatpush1.xpose.msra.mxu0 0.0
    %143 = vmatprep.subr.mxu0 0.0
    %144 = vmatpush1.xpose.msra.mxu0 0.0
    %145 = vmatprep.subr.mxu0 0.0
    %146 = vmatpush1.xpose.msra.mxu0 0.0
    %147 = vmatprep.subr.mxu0 0.0
    %148 = vmatpush1.xpose.msra.mxu0 0.0
    %149 = vmatprep.subr.mxu0 0.0
    %150 = vmatpush1.xpose.msra.mxu0 0.0
    %151 = vmatprep.subr.mxu0 0.0
    %152 = vmatpush1.xpose.msra.mxu0 0.0
    %153 = vmatprep.subr.mxu0 0.0
    %154 = vmatpush1.xpose.msra.mxu0 0.0
    %155 = vmatprep.subr.mxu0 0.0
    %156 = vmatpush1.xpose.msra.mxu0 0.0
    %157 = vmatprep.subr.mxu0 0.0
    %158 = vmatpush1.xpose.msra.mxu0 0.0
    %159 = vmatprep.subr.mxu0 0.0
    %160 = vmatpush1.xpose.msra.mxu0 0.0
    %161 = vmatprep.subr.mxu0 0.0
    %162 = vmatpush1.xpose.msra.mxu0 0.0
    %163 = vmatprep.subr.mxu0 0.0
    %164 = vmatpush1.xpose.msra.mxu0 0.0
    %165 = vmatprep.subr.mxu0 0.0
    %166 = vmatpush1.xpose.msra.mxu0 0.0
    %167 = vmatprep.subr.mxu0 0.0
    %168 = vmatpush1.xpose.msra.mxu0 0.0
    %169 = vmatprep.subr.mxu0 0.0
    %170 = vmatpush1.xpose.msra.mxu0 0.0
    %171 = vmatprep.subr.mxu0 0.0
    %172 = vmatpush1.xpose.msra.mxu0 0.0
    %173 = vmatprep.subr.mxu0 0.0
    %174 = vmatpush1.xpose.msra.mxu0 0.0
    %175 = vmatprep.subr.mxu0 0.0
    %176 = vmatpush1.xpose.msra.mxu0 0.0
    %177 = vmatprep.subr.mxu0 0.0
    %178 = vmatpush1.xpose.msra.mxu0 0.0
    %179 = vmatprep.subr.mxu0 0.0
    %180 = vmatpush1.xpose.msra.mxu0 0.0
    %181 = vmatprep.subr.mxu0 0.0
    %182 = vmatpush1.xpose.msra.mxu0 0.0
    %183 = vmatprep.subr.mxu0 0.0
    %184 = vmatpush1.xpose.msra.mxu0 0.0
    %185 = vmatprep.subr.mxu0 0.0
    %186 = vmatpush1.xpose.msra.mxu0 0.0
    %187 = vmatprep.subr.mxu0 0.0
    %188 = vmatpush1.xpose.msra.mxu0 0.0
    %189 = vmatprep.subr.mxu0 0.0
    %190 = vmatpush1.xpose.msra.mxu0 0.0
    %191 = vmatprep.subr.mxu0 0.0
    %192 = vmatpush1.xpose.msra.mxu0 0.0
    %193 = vmatprep.subr.mxu0 0.0
    %194 = vmatpush1.xpose.msra.mxu0 0.0
    %195 = vmatprep.mubr.f32.mxu0 0.0
    %196 = vmatmul.mubr.f32.gmra.mrb[0].mxu0 %v127
    %v197 = vpop.f32.mrb[0].mxu0
    %v198 = vadd.f32 0.0, %v197
    %v199 = vpop.f32.mrb[0].mxu0
    %200 = vdwg.mxu0
    %202 = vrot.lane.b32.xlu0 %v120, 96
    %v203 = vpop.permute.xlu0 %202
    %v204 = vsel %vm126, %v120, 0
    %v206 = vsel %vm126, %v203, 0
    %208 = vmatprep.subr.mxu0 0.0
    %209 = vmatpush1.xpose.msra.mxu0 %v206
    %210 = vmatprep.subr.mxu0 0.0
    %211 = vmatpush1.xpose.msra.mxu0 0.0
    %212 = vmatprep.subr.mxu0 0.0
    %213 = vmatpush1.xpose.msra.mxu0 0.0
    %214 = vmatprep.subr.mxu0 0.0
    %215 = vmatpush1.xpose.msra.mxu0 0.0
    %216 = vmatprep.subr.mxu0 0.0
    %217 = vmatpush1.xpose.msra.mxu0 0.0
    %218 = vmatprep.subr.mxu0 0.0
    %219 = vmatpush1.xpose.msra.mxu0 0.0
    %220 = vmatprep.subr.mxu0 0.0
    %221 = vmatpush1.xpose.msra.mxu0 0.0
    %222 = vmatprep.subr.mxu0 0.0
    %223 = vmatpush1.xpose.msra.mxu0 0.0
    %224 = vmatprep.subr.mxu0 0.0
    %225 = vmatpush1.xpose.msra.mxu0 0.0
    %226 = vmatprep.subr.mxu0 0.0
    %227 = vmatpush1.xpose.msra.mxu0 0.0
    %228 = vmatprep.subr.mxu0 0.0
    %229 = vmatpush1.xpose.msra.mxu0 0.0
    %230 = vmatprep.subr.mxu0 0.0
    %231 = vmatpush1.xpose.msra.mxu0 0.0
    %232 = vmatprep.subr.mxu0 0.0
    %233 = vmatpush1.xpose.msra.mxu0 0.0
    %234 = vmatprep.subr.mxu0 0.0
    %235 = vmatpush1.xpose.msra.mxu0 0.0
    %236 = vmatprep.subr.mxu0 0.0
    %237 = vmatpush1.xpose.msra.mxu0 0.0
    %238 = vmatprep.subr.mxu0 0.0
    %239 = vmatpush1.xpose.msra.mxu0 0.0
    %240 = vmatprep.subr.mxu0 0.0
    %241 = vmatpush1.xpose.msra.mxu0 0.0
    %242 = vmatprep.subr.mxu0 0.0
    %243 = vmatpush1.xpose.msra.mxu0 0.0
    %244 = vmatprep.subr.mxu0 0.0
    %245 = vmatpush1.xpose.msra.mxu0 0.0
    %246 = vmatprep.subr.mxu0 0.0
    %247 = vmatpush1.xpose.msra.mxu0 0.0
    %248 = vmatprep.subr.mxu0 0.0
    %249 = vmatpush1.xpose.msra.mxu0 0.0
    %250 = vmatprep.subr.mxu0 0.0
    %251 = vmatpush1.xpose.msra.mxu0 0.0
    %252 = vmatprep.subr.mxu0 0.0
    %253 = vmatpush1.xpose.msra.mxu0 0.0
    %254 = vmatprep.subr.mxu0 0.0
    %255 = vmatpush1.xpose.msra.mxu0 0.0
    %256 = vmatprep.subr.mxu0 0.0
    %257 = vmatpush1.xpose.msra.mxu0 0.0
    %258 = vmatprep.subr.mxu0 0.0
    %259 = vmatpush1.xpose.msra.mxu0 0.0
    %260 = vmatprep.subr.mxu0 0.0
    %261 = vmatpush1.xpose.msra.mxu0 0.0
    %262 = vmatprep.subr.mxu0 0.0
    %263 = vmatpush1.xpose.msra.mxu0 0.0
    %264 = vmatprep.subr.mxu0 0.0
    %265 = vmatpush1.xpose.msra.mxu0 0.0
    %266 = vmatprep.subr.mxu0 0.0
    %267 = vmatpush1.xpose.msra.mxu0 0.0
    %268 = vmatprep.subr.mxu0 0.0
    %269 = vmatpush1.xpose.msra.mxu0 0.0
    %270 = vmatprep.subr.mxu0 0.0
    %271 = vmatpush1.xpose.msra.mxu0 0.0
    %272 = vmatprep.mubr.f32.mxu0 0.0
    %273 = vmatmul.mubr.f32.gmra.mrb[0].mxu0 %v204
    %v274 = vpop.f32.mrb[0].mxu0
    %v275 = vadd.f32 0.0, %v274
    %v276 = vpop.f32.mrb[0].mxu0
    %277 = vdwg.mxu0
    %v278 = vmul.f32 %v198, 0.35355338
    %v279 = vmul.f32 %v275, 0.35355338
    %v280 = vsel %vm126, %v278, -inf
    %281 = vmax.xlane.f32.xlu0 %v280
    %v282 = vpop.xlane.xlu0 %281
    %v283 = vsel %vm126, %v279, -inf
    %284 = vmax.xlane.f32.xlu0 %v283
    %v285 = vpop.xlane.xlu0 %284
    %v286 = vsub.f32 %v278, %v282
    %v287 = vsub.f32 %v279, %v285
    %v288 = vmul.f32 %v286, 1.442695
    %v289 = vpow.pop %v288
    %v290 = vmul.f32 %v287, 1.442695
    %v291 = vpow.pop %v290
    %v292 = vsel %vm126, %v289, 0.0
    %293 = vadd.xlane.f32.xlu0 %v292
    %v294 = vpop.xlane.xlu0 %293
    %v295 = vsel %vm126, %v291, 0.0
    %296 = vadd.xlane.f32.xlu0 %v295
    %v297 = vpop.xlane.xlu0 %296
    %v298 = vrcp.pop %v294
    %v299 = vrcp.pop %v297
    %v300 = vmul.f32 %v289, %v298
    %v301 = vmul.f32 %v291, %v299
    %302 = vrot.lane.b32.xlu0 %v115, 64
    %v303 = vpop.permute.xlu0 %302
    %v306 = vsel %vm126, %v300, 0
    %308 = vmatprep.subr.mxu0 0.0
    %309 = vmatpush1.msra.mxu0 %v303
    %310 = vmatprep.subr.mxu0 0.0
    %311 = vmatpush1.msra.mxu0 0.0
    %312 = vmatprep.subr.mxu0 0.0
    %313 = vmatpush1.msra.mxu0 0.0
    %314 = vmatprep.subr.mxu0 0.0
    %315 = vmatpush1.msra.mxu0 0.0
    %316 = vmatprep.subr.mxu0 0.0
    %317 = vmatpush1.msra.mxu0 0.0
    %318 = vmatprep.subr.mxu0 0.0
    %319 = vmatpush1.msra.mxu0 0.0
    %320 = vmatprep.subr.mxu0 0.0
    %321 = vmatpush1.msra.mxu0 0.0
    %322 = vmatprep.subr.mxu0 0.0
    %323 = vmatpush1.msra.mxu0 0.0
    %324 = vmatprep.subr.mxu0 0.0
    %325 = vmatpush1.msra.mxu0 0.0
    %326 = vmatprep.subr.mxu0 0.0
    %327 = vmatpush1.msra.mxu0 0.0
    %328 = vmatprep.subr.mxu0 0.0
    %329 = vmatpush1.msra.mxu0 0.0
    %330 = vmatprep.subr.mxu0 0.0
    %331 = vmatpush1.msra.mxu0 0.0
    %332 = vmatprep.subr.mxu0 0.0
    %333 = vmatpush1.msra.mxu0 0.0
    %334 = vmatprep.subr.mxu0 0.0
    %335 = vmatpush1.msra.mxu0 0.0
    %336 = vmatprep.subr.mxu0 0.0
    %337 = vmatpush1.msra.mxu0 0.0
    %338 = vmatprep.subr.mxu0 0.0
    %339 = vmatpush1.msra.mxu0 0.0
    %340 = vmatprep.subr.mxu0 0.0
    %341 = vmatpush1.msra.mxu0 0.0
    %342 = vmatprep.subr.mxu0 0.0
    %343 = vmatpush1.msra.mxu0 0.0
    %344 = vmatprep.subr.mxu0 0.0
    %345 = vmatpush1.msra.mxu0 0.0
    %346 = vmatprep.subr.mxu0 0.0
    %347 = vmatpush1.msra.mxu0 0.0
    %348 = vmatprep.subr.mxu0 0.0
    %349 = vmatpush1.msra.mxu0 0.0
    %350 = vmatprep.subr.mxu0 0.0
    %351 = vmatpush1.msra.mxu0 0.0
    %352 = vmatprep.subr.mxu0 0.0
    %353 = vmatpush1.msra.mxu0 0.0
    %354 = vmatprep.subr.mxu0 0.0
    %355 = vmatpush1.msra.mxu0 0.0
    %356 = vmatprep.subr.mxu0 0.0
    %357 = vmatpush1.msra.mxu0 0.0
    %358 = vmatprep.subr.mxu0 0.0
    %359 = vmatpush1.msra.mxu0 0.0
    %360 = vmatprep.subr.mxu0 0.0
    %361 = vmatpush1.msra.mxu0 0.0
    %362 = vmatprep.subr.mxu0 0.0
    %363 = vmatpush1.msra.mxu0 0.0
    %364 = vmatprep.subr.mxu0 0.0
    %365 = vmatpush1.msra.mxu0 0.0
    %366 = vmatprep.subr.mxu0 0.0
    %367 = vmatpush1.msra.mxu0 0.0
    %368 = vmatprep.subr.mxu0 0.0
    %369 = vmatpush1.msra.mxu0 0.0
    %370 = vmatprep.subr.mxu0 0.0
    %371 = vmatpush1.msra.mxu0 0.0
    %372 = vmatprep.mubr.f32.mxu0 0.0
    %373 = vmatmul.mubr.f32.gmra.mrb[0].mxu0 %v306
    %v374 = vpop.f32.mrb[0].mxu0
    %v375 = vadd.f32 0.0, %v374
    %v376 = vpop.f32.mrb[0].mxu0
    %377 = vdwg.mxu0
    %378 = vrot.lane.b32.xlu0 %v120, 64
    %v379 = vpop.permute.xlu0 %378
    %v382 = vsel %vm126, %v301, 0
    %384 = vmatprep.subr.mxu0 0.0
    %385 = vmatpush1.msra.mxu0 %v379
    %386 = vmatprep.subr.mxu0 0.0
    %387 = vmatpush1.msra.mxu0 0.0
    %388 = vmatprep.subr.mxu0 0.0
    %389 = vmatpush1.msra.mxu0 0.0
    %390 = vmatprep.subr.mxu0 0.0
    %391 = vmatpush1.msra.mxu0 0.0
    %392 = vmatprep.subr.mxu0 0.0
    %393 = vmatpush1.msra.mxu0 0.0
    %394 = vmatprep.subr.mxu0 0.0
    %395 = vmatpush1.msra.mxu0 0.0
    %396 = vmatprep.subr.mxu0 0.0
    %397 = vmatpush1.msra.mxu0 0.0
    %398 = vmatprep.subr.mxu0 0.0
    %399 = vmatpush1.msra.mxu0 0.0
    %400 = vmatprep.subr.mxu0 0.0
    %401 = vmatpush1.msra.mxu0 0.0
    %402 = vmatprep.subr.mxu0 0.0
    %403 = vmatpush1.msra.mxu0 0.0
    %404 = vmatprep.subr.mxu0 0.0
    %405 = vmatpush1.msra.mxu0 0.0
    %406 = vmatprep.subr.mxu0 0.0
    %407 = vmatpush1.msra.mxu0 0.0
    %408 = vmatprep.subr.mxu0 0.0
    %409 = vmatpush1.msra.mxu0 0.0
    %410 = vmatprep.subr.mxu0 0.0
    %411 = vmatpush1.msra.mxu0 0.0
    %412 = vmatprep.subr.mxu0 0.0
    %413 = vmatpush1.msra.mxu0 0.0
    %414 = vmatprep.subr.mxu0 0.0
    %415 = vmatpush1.msra.mxu0 0.0
    %416 = vmatprep.subr.mxu0 0.0
    %417 = vmatpush1.msra.mxu0 0.0
    %418 = vmatprep.subr.mxu0 0.0
    %419 = vmatpush1.msra.mxu0 0.0
    %420 = vmatprep.subr.mxu0 0.0
    %421 = vmatpush1.msra.mxu0 0.0
    %422 = vmatprep.subr.mxu0 0.0
    %423 = vmatpush1.msra.mxu0 0.0
    %424 = vmatprep.subr.mxu0 0.0
    %425 = vmatpush1.msra.mxu0 0.0
    %426 = vmatprep.subr.mxu0 0.0
    %427 = vmatpush1.msra.mxu0 0.0
    %428 = vmatprep.subr.mxu0 0.0
    %429 = vmatpush1.msra.mxu0 0.0
    %430 = vmatprep.subr.mxu0 0.0
    %431 = vmatpush1.msra.mxu0 0.0
    %432 = vmatprep.subr.mxu0 0.0
    %433 = vmatpush1.msra.mxu0 0.0
    %434 = vmatprep.subr.mxu0 0.0
    %435 = vmatpush1.msra.mxu0 0.0
    %436 = vmatprep.subr.mxu0 0.0
    %437 = vmatpush1.msra.mxu0 0.0
    %438 = vmatprep.subr.mxu0 0.0
    %439 = vmatpush1.msra.mxu0 0.0
    %440 = vmatprep.subr.mxu0 0.0
    %441 = vmatpush1.msra.mxu0 0.0
    %442 = vmatprep.subr.mxu0 0.0
    %443 = vmatpush1.msra.mxu0 0.0
    %444 = vmatprep.subr.mxu0 0.0
    %445 = vmatpush1.msra.mxu0 0.0
    %446 = vmatprep.subr.mxu0 0.0
    %447 = vmatpush1.msra.mxu0 0.0
    %448 = vmatprep.mubr.f32.mxu0 0.0
    %449 = vmatmul.mubr.f32.gmra.mrb[0].mxu0 %v382
    %v450 = vpop.f32.mrb[0].mxu0
    %v451 = vadd.f32 0.0, %v450
    %v452 = vpop.f32.mrb[0].mxu0
    %453 = vdwg.mxu0
    %454 = vrot.lane.b32.xlu0 %v115, 120
    %v455 = vpop.permute.xlu0 %454
    %456 = vrot.lane.b32.xlu0 %v115, 88
    %v457 = vpop.permute.xlu0 %456
    %v458 = vsel %vm126, %v455, 0
    %v460 = vsel %vm126, %v457, 0
    %462 = vmatprep.subr.mxu0 0.0
    %463 = vmatpush1.xpose.msra.mxu0 %v460
    %464 = vmatprep.subr.mxu0 0.0
    %465 = vmatpush1.xpose.msra.mxu0 0.0
    %466 = vmatprep.subr.mxu0 0.0
    %467 = vmatpush1.xpose.msra.mxu0 0.0
    %468 = vmatprep.subr.mxu0 0.0
    %469 = vmatpush1.xpose.msra.mxu0 0.0
    %470 = vmatprep.subr.mxu0 0.0
    %471 = vmatpush1.xpose.msra.mxu0 0.0
    %472 = vmatprep.subr.mxu0 0.0
    %473 = vmatpush1.xpose.msra.mxu0 0.0
    %474 = vmatprep.subr.mxu0 0.0
    %475 = vmatpush1.xpose.msra.mxu0 0.0
    %476 = vmatprep.subr.mxu0 0.0
    %477 = vmatpush1.xpose.msra.mxu0 0.0
    %478 = vmatprep.subr.mxu0 0.0
    %479 = vmatpush1.xpose.msra.mxu0 0.0
    %480 = vmatprep.subr.mxu0 0.0
    %481 = vmatpush1.xpose.msra.mxu0 0.0
    %482 = vmatprep.subr.mxu0 0.0
    %483 = vmatpush1.xpose.msra.mxu0 0.0
    %484 = vmatprep.subr.mxu0 0.0
    %485 = vmatpush1.xpose.msra.mxu0 0.0
    %486 = vmatprep.subr.mxu0 0.0
    %487 = vmatpush1.xpose.msra.mxu0 0.0
    %488 = vmatprep.subr.mxu0 0.0
    %489 = vmatpush1.xpose.msra.mxu0 0.0
    %490 = vmatprep.subr.mxu0 0.0
    %491 = vmatpush1.xpose.msra.mxu0 0.0
    %492 = vmatprep.subr.mxu0 0.0
    %493 = vmatpush1.xpose.msra.mxu0 0.0
    %494 = vmatprep.subr.mxu0 0.0
    %495 = vmatpush1.xpose.msra.mxu0 0.0
    %496 = vmatprep.subr.mxu0 0.0
    %497 = vmatpush1.xpose.msra.mxu0 0.0
    %498 = vmatprep.subr.mxu0 0.0
    %499 = vmatpush1.xpose.msra.mxu0 0.0
    %500 = vmatprep.subr.mxu0 0.0
    %501 = vmatpush1.xpose.msra.mxu0 0.0
    %502 = vmatprep.subr.mxu0 0.0
    %503 = vmatpush1.xpose.msra.mxu0 0.0
    %504 = vmatprep.subr.mxu0 0.0
    %505 = vmatpush1.xpose.msra.mxu0 0.0
    %506 = vmatprep.subr.mxu0 0.0
    %507 = vmatpush1.xpose.msra.mxu0 0.0
    %508 = vmatprep.subr.mxu0 0.0
    %509 = vmatpush1.xpose.msra.mxu0 0.0
    %510 = vmatprep.subr.mxu0 0.0
    %511 = vmatpush1.xpose.msra.mxu0 0.0
    %512 = vmatprep.subr.mxu0 0.0
    %513 = vmatpush1.xpose.msra.mxu0 0.0
    %514 = vmatprep.subr.mxu0 0.0
    %515 = vmatpush1.xpose.msra.mxu0 0.0
    %516 = vmatprep.subr.mxu0 0.0
    %517 = vmatpush1.xpose.msra.mxu0 0.0
    %518 = vmatprep.subr.mxu0 0.0
    %519 = vmatpush1.xpose.msra.mxu0 0.0
    %520 = vmatprep.subr.mxu0 0.0
    %521 = vmatpush1.xpose.msra.mxu0 0.0
    %522 = vmatprep.subr.mxu0 0.0
    %523 = vmatpush1.xpose.msra.mxu0 0.0
    %524 = vmatprep.subr.mxu0 0.0
    %525 = vmatpush1.xpose.msra.mxu0 0.0
    %526 = vmatprep.mubr.f32.mxu0 0.0
    %527 = vmatmul.mubr.f32.gmra.mrb[0].mxu0 %v458
    %v528 = vpop.f32.mrb[0].mxu0
    %v529 = vadd.f32 0.0, %v528
    %v530 = vpop.f32.mrb[0].mxu0
    %531 = vdwg.mxu0
    %532 = vrot.lane.b32.xlu0 %v120, 120
    %v533 = vpop.permute.xlu0 %532
    %534 = vrot.lane.b32.xlu0 %v120, 88
    %v535 = vpop.permute.xlu0 %534
    %v536 = vsel %vm126, %v533, 0
    %v538 = vsel %vm126, %v535, 0
    %540 = vmatprep.subr.mxu0 0.0
    %541 = vmatpush1.xpose.msra.mxu0 %v538
    %542 = vmatprep.subr.mxu0 0.0
    %543 = vmatpush1.xpose.msra.mxu0 0.0
    %544 = vmatprep.subr.mxu0 0.0
    %545 = vmatpush1.xpose.msra.mxu0 0.0
    %546 = vmatprep.subr.mxu0 0.0
    %547 = vmatpush1.xpose.msra.mxu0 0.0
    %548 = vmatprep.subr.mxu0 0.0
    %549 = vmatpush1.xpose.msra.mxu0 0.0
    %550 = vmatprep.subr.mxu0 0.0
    %551 = vmatpush1.xpose.msra.mxu0 0.0
    %552 = vmatprep.subr.mxu0 0.0
    %553 = vmatpush1.xpose.msra.mxu0 0.0
    %554 = vmatprep.subr.mxu0 0.0
    %555 = vmatpush1.xpose.msra.mxu0 0.0
    %556 = vmatprep.subr.mxu0 0.0
    %557 = vmatpush1.xpose.msra.mxu0 0.0
    %558 = vmatprep.subr.mxu0 0.0
    %559 = vmatpush1.xpose.msra.mxu0 0.0
    %560 = vmatprep.subr.mxu0 0.0
    %561 = vmatpush1.xpose.msra.mxu0 0.0
    %562 = vmatprep.subr.mxu0 0.0
    %563 = vmatpush1.xpose.msra.mxu0 0.0
    %564 = vmatprep.subr.mxu0 0.0
    %565 = vmatpush1.xpose.msra.mxu0 0.0
    %566 = vmatprep.subr.mxu0 0.0
    %567 = vmatpush1.xpose.msra.mxu0 0.0
    %568 = vmatprep.subr.mxu0 0.0
    %569 = vmatpush1.xpose.msra.mxu0 0.0
    %570 = vmatprep.subr.mxu0 0.0
    %571 = vmatpush1.xpose.msra.mxu0 0.0
    %572 = vmatprep.subr.mxu0 0.0
    %573 = vmatpush1.xpose.msra.mxu0 0.0
    %574 = vmatprep.subr.mxu0 0.0
    %575 = vmatpush1.xpose.msra.mxu0 0.0
    %576 = vmatprep.subr.mxu0 0.0
    %577 = vmatpush1.xpose.msra.mxu0 0.0
    %578 = vmatprep.subr.mxu0 0.0
    %579 = vmatpush1.xpose.msra.mxu0 0.0
    %580 = vmatprep.subr.mxu0 0.0
    %581 = vmatpush1.xpose.msra.mxu0 0.0
    %582 = vmatprep.subr.mxu0 0.0
    %583 = vmatpush1.xpose.msra.mxu0 0.0
    %584 = vmatprep.subr.mxu0 0.0
    %585 = vmatpush1.xpose.msra.mxu0 0.0
    %586 = vmatprep.subr.mxu0 0.0
    %587 = vmatpush1.xpose.msra.mxu0 0.0
    %588 = vmatprep.subr.mxu0 0.0
    %589 = vmatpush1.xpose.msra.mxu0 0.0
    %590 = vmatprep.subr.mxu0 0.0
    %591 = vmatpush1.xpose.msra.mxu0 0.0
    %592 = vmatprep.subr.mxu0 0.0
    %593 = vmatpush1.xpose.msra.mxu0 0.0
    %594 = vmatprep.subr.mxu0 0.0
    %595 = vmatpush1.xpose.msra.mxu0 0.0
    %596 = vmatprep.subr.mxu0 0.0
    %597 = vmatpush1.xpose.msra.mxu0 0.0
    %598 = vmatprep.subr.mxu0 0.0
    %599 = vmatpush1.xpose.msra.mxu0 0.0
    %600 = vmatprep.subr.mxu0 0.0
    %601 = vmatpush1.xpose.msra.mxu0 0.0
    %602 = vmatprep.subr.mxu0 0.0
    %603 = vmatpush1.xpose.msra.mxu0 0.0
    %604 = vmatprep.mubr.f32.mxu0 0.0
    %605 = vmatmul.mubr.f32.gmra.mrb[0].mxu0 %v536
    %v606 = vpop.f32.mrb[0].mxu0
    %v607 = vadd.f32 0.0, %v606
    %v608 = vpop.f32.mrb[0].mxu0
    %609 = vdwg.mxu0
    %v610 = vmul.f32 %v529, 0.35355338
    %v611 = vmul.f32 %v607, 0.35355338
    %v612 = vsel %vm126, %v610, -inf
    %613 = vmax.xlane.f32.xlu0 %v612
    %v614 = vpop.xlane.xlu0 %613
    %v615 = vsel %vm126, %v611, -inf
    %616 = vmax.xlane.f32.xlu0 %v615
    %v617 = vpop.xlane.xlu0 %616
    %v618 = vsub.f32 %v610, %v614
    %v619 = vsub.f32 %v611, %v617
    %v620 = vmul.f32 %v618, 1.442695
    %v621 = vpow.pop %v620
    %v622 = vmul.f32 %v619, 1.442695
    %v623 = vpow.pop %v622
    %v624 = vsel %vm126, %v621, 0.0
    %625 = vadd.xlane.f32.xlu0 %v624
    %v626 = vpop.xlane.xlu0 %625
    %v627 = vsel %vm126, %v623, 0.0
    %628 = vadd.xlane.f32.xlu0 %v627
    %v629 = vpop.xlane.xlu0 %628
    %v630 = vrcp.pop %v626
    %v631 = vrcp.pop %v629
    %v632 = vmul.f32 %v621, %v630
    %v633 = vmul.f32 %v623, %v631
    %634 = vrot.lane.b32.xlu0 %v115, 56
    %v635 = vpop.permute.xlu0 %634
    %v638 = vsel %vm126, %v632, 0
    %640 = vmatprep.subr.mxu0 0.0
    %641 = vmatpush1.msra.mxu0 %v635
    %642 = vmatprep.subr.mxu0 0.0
    %643 = vmatpush1.msra.mxu0 0.0
    %644 = vmatprep.subr.mxu0 0.0
    %645 = vmatpush1.msra.mxu0 0.0
    %646 = vmatprep.subr.mxu0 0.0
    %647 = vmatpush1.msra.mxu0 0.0
    %648 = vmatprep.subr.mxu0 0.0
    %649 = vmatpush1.msra.mxu0 0.0
    %650 = vmatprep.subr.mxu0 0.0
    %651 = vmatpush1.msra.mxu0 0.0
    %652 = vmatprep.subr.mxu0 0.0
    %653 = vmatpush1.msra.mxu0 0.0
    %654 = vmatprep.subr.mxu0 0.0
    %655 = vmatpush1.msra.mxu0 0.0
    %656 = vmatprep.subr.mxu0 0.0
    %657 = vmatpush1.msra.mxu0 0.0
    %658 = vmatprep.subr.mxu0 0.0
    %659 = vmatpush1.msra.mxu0 0.0
    %660 = vmatprep.subr.mxu0 0.0
    %661 = vmatpush1.msra.mxu0 0.0
    %662 = vmatprep.subr.mxu0 0.0
    %663 = vmatpush1.msra.mxu0 0.0
    %664 = vmatprep.subr.mxu0 0.0
    %665 = vmatpush1.msra.mxu0 0.0
    %666 = vmatprep.subr.mxu0 0.0
    %667 = vmatpush1.msra.mxu0 0.0
    %668 = vmatprep.subr.mxu0 0.0
    %669 = vmatpush1.msra.mxu0 0.0
    %670 = vmatprep.subr.mxu0 0.0
    %671 = vmatpush1.msra.mxu0 0.0
    %672 = vmatprep.subr.mxu0 0.0
    %673 = vmatpush1.msra.mxu0 0.0
    %674 = vmatprep.subr.mxu0 0.0
    %675 = vmatpush1.msra.mxu0 0.0
    %676 = vmatprep.subr.mxu0 0.0
    %677 = vmatpush1.msra.mxu0 0.0
    %678 = vmatprep.subr.mxu0 0.0
    %679 = vmatpush1.msra.mxu0 0.0
    %680 = vmatprep.subr.mxu0 0.0
    %681 = vmatpush1.msra.mxu0 0.0
    %682 = vmatprep.subr.mxu0 0.0
    %683 = vmatpush1.msra.mxu0 0.0
    %684 = vmatprep.subr.mxu0 0.0
    %685 = vmatpush1.msra.mxu0 0.0
    %686 = vmatprep.subr.mxu0 0.0
    %687 = vmatpush1.msra.mxu0 0.0
    %688 = vmatprep.subr.mxu0 0.0
    %689 = vmatpush1.msra.mxu0 0.0
    %690 = vmatprep.subr.mxu0 0.0
    %691 = vmatpush1.msra.mxu0 0.0
    %692 = vmatprep.subr.mxu0 0.0
    %693 = vmatpush1.msra.mxu0 0.0
    %694 = vmatprep.subr.mxu0 0.0
    %695 = vmatpush1.msra.mxu0 0.0
    %696 = vmatprep.subr.mxu0 0.0
    %697 = vmatpush1.msra.mxu0 0.0
    %698 = vmatprep.subr.mxu0 0.0
    %699 = vmatpush1.msra.mxu0 0.0
    %700 = vmatprep.subr.mxu0 0.0
    %701 = vmatpush1.msra.mxu0 0.0
    %702 = vmatprep.subr.mxu0 0.0
    %703 = vmatpush1.msra.mxu0 0.0
    %704 = vmatprep.mubr.f32.mxu0 0.0
    %705 = vmatmul.mubr.f32.gmra.mrb[0].mxu0 %v638
    %v706 = vpop.f32.mrb[0].mxu0
    %v707 = vadd.f32 0.0, %v706
    %v708 = vpop.f32.mrb[0].mxu0
    %709 = vdwg.mxu0
    %710 = vrot.lane.b32.xlu0 %v120, 56
    %v711 = vpop.permute.xlu0 %710
    %v714 = vsel %vm126, %v633, 0
    %716 = vmatprep.subr.mxu0 0.0
    %717 = vmatpush1.msra.mxu0 %v711
    %718 = vmatprep.subr.mxu0 0.0
    %719 = vmatpush1.msra.mxu0 0.0
    %720 = vmatprep.subr.mxu0 0.0
    %721 = vmatpush1.msra.mxu0 0.0
    %722 = vmatprep.subr.mxu0 0.0
    %723 = vmatpush1.msra.mxu0 0.0
    %724 = vmatprep.subr.mxu0 0.0
    %725 = vmatpush1.msra.mxu0 0.0
    %726 = vmatprep.subr.mxu0 0.0
    %727 = vmatpush1.msra.mxu0 0.0
    %728 = vmatprep.subr.mxu0 0.0
    %729 = vmatpush1.msra.mxu0 0.0
    %730 = vmatprep.subr.mxu0 0.0
    %731 = vmatpush1.msra.mxu0 0.0
    %732 = vmatprep.subr.mxu0 0.0
    %733 = vmatpush1.msra.mxu0 0.0
    %734 = vmatprep.subr.mxu0 0.0
    %735 = vmatpush1.msra.mxu0 0.0
    %736 = vmatprep.subr.mxu0 0.0
    %737 = vmatpush1.msra.mxu0 0.0
    %738 = vmatprep.subr.mxu0 0.0
    %739 = vmatpush1.msra.mxu0 0.0
    %740 = vmatprep.subr.mxu0 0.0
    %741 = vmatpush1.msra.mxu0 0.0
    %742 = vmatprep.subr.mxu0 0.0
    %743 = vmatpush1.msra.mxu0 0.0
    %744 = vmatprep.subr.mxu0 0.0
    %745 = vmatpush1.msra.mxu0 0.0
    %746 = vmatprep.subr.mxu0 0.0
    %747 = vmatpush1.msra.mxu0 0.0
    %748 = vmatprep.subr.mxu0 0.0
    %749 = vmatpush1.msra.mxu0 0.0
    %750 = vmatprep.subr.mxu0 0.0
    %751 = vmatpush1.msra.mxu0 0.0
    %752 = vmatprep.subr.mxu0 0.0
    %753 = vmatpush1.msra.mxu0 0.0
    %754 = vmatprep.subr.mxu0 0.0
    %755 = vmatpush1.msra.mxu0 0.0
    %756 = vmatprep.subr.mxu0 0.0
    %757 = vmatpush1.msra.mxu0 0.0
    %758 = vmatprep.subr.mxu0 0.0
    %759 = vmatpush1.msra.mxu0 0.0
    %760 = vmatprep.subr.mxu0 0.0
    %761 = vmatpush1.msra.mxu0 0.0
    %762 = vmatprep.subr.mxu0 0.0
    %763 = vmatpush1.msra.mxu0 0.0
    %764 = vmatprep.subr.mxu0 0.0
    %765 = vmatpush1.msra.mxu0 0.0
    %766 = vmatprep.subr.mxu0 0.0
    %767 = vmatpush1.msra.mxu0 0.0
    %768 = vmatprep.subr.mxu0 0.0
    %769 = vmatpush1.msra.mxu0 0.0
    %770 = vmatprep.subr.mxu0 0.0
    %771 = vmatpush1.msra.mxu0 0.0
    %772 = vmatprep.subr.mxu0 0.0
    %773 = vmatpush1.msra.mxu0 0.0
    %774 = vmatprep.subr.mxu0 0.0
    %775 = vmatpush1.msra.mxu0 0.0
    %776 = vmatprep.subr.mxu0 0.0
    %777 = vmatpush1.msra.mxu0 0.0
    %778 = vmatprep.subr.mxu0 0.0
    %779 = vmatpush1.msra.mxu0 0.0
    %780 = vmatprep.mubr.f32.mxu0 0.0
    %781 = vmatmul.mubr.f32.gmra.mrb[0].mxu0 %v714
    %v782 = vpop.f32.mrb[0].mxu0
    %v783 = vadd.f32 0.0, %v782
    %v784 = vpop.f32.mrb[0].mxu0
    %785 = vdwg.mxu0
    %787 = vrot.lane.b32.xlu0 %v22, 32
    %v788 = vpop.permute.xlu0 %787
    %v791 = vsel %vm126, %v707, 0
    %v794 = vsel %vm126, %v783, 0
    %796 = vmatprep.subr.mxu0 0.0
    %797 = vmatpush1.msra.mxu0 %v788
    %798 = vmatprep.subr.mxu0 0.0
    %799 = vmatpush1.msra.mxu0 0.0
    %800 = vmatprep.subr.mxu0 0.0
    %801 = vmatpush1.msra.mxu0 0.0
    %802 = vmatprep.subr.mxu0 0.0
    %803 = vmatpush1.msra.mxu0 0.0
    %804 = vmatprep.subr.mxu0 0.0
    %805 = vmatpush1.msra.mxu0 0.0
    %806 = vmatprep.subr.mxu0 0.0
    %807 = vmatpush1.msra.mxu0 0.0
    %808 = vmatprep.subr.mxu0 0.0
    %809 = vmatpush1.msra.mxu0 0.0
    %810 = vmatprep.subr.mxu0 0.0
    %811 = vmatpush1.msra.mxu0 0.0
    %812 = vmatprep.subr.mxu0 0.0
    %813 = vmatpush1.msra.mxu0 0.0
    %814 = vmatprep.subr.mxu0 0.0
    %815 = vmatpush1.msra.mxu0 0.0
    %816 = vmatprep.subr.mxu0 0.0
    %817 = vmatpush1.msra.mxu0 0.0
    %818 = vmatprep.subr.mxu0 0.0
    %819 = vmatpush1.msra.mxu0 0.0
    %820 = vmatprep.subr.mxu0 0.0
    %821 = vmatpush1.msra.mxu0 0.0
    %822 = vmatprep.subr.mxu0 0.0
    %823 = vmatpush1.msra.mxu0 0.0
    %824 = vmatprep.subr.mxu0 0.0
    %825 = vmatpush1.msra.mxu0 0.0
    %826 = vmatprep.subr.mxu0 0.0
    %827 = vmatpush1.msra.mxu0 0.0
    %828 = vmatprep.subr.mxu0 0.0
    %829 = vmatpush1.msra.mxu0 0.0
    %830 = vmatprep.subr.mxu0 0.0
    %831 = vmatpush1.msra.mxu0 0.0
    %832 = vmatprep.subr.mxu0 0.0
    %833 = vmatpush1.msra.mxu0 0.0
    %834 = vmatprep.subr.mxu0 0.0
    %835 = vmatpush1.msra.mxu0 0.0
    %836 = vmatprep.subr.mxu0 0.0
    %837 = vmatpush1.msra.mxu0 0.0
    %838 = vmatprep.subr.mxu0 0.0
    %839 = vmatpush1.msra.mxu0 0.0
    %840 = vmatprep.subr.mxu0 0.0
    %841 = vmatpush1.msra.mxu0 0.0
    %842 = vmatprep.subr.mxu0 0.0
    %843 = vmatpush1.msra.mxu0 0.0
    %844 = vmatprep.subr.mxu0 0.0
    %845 = vmatpush1.msra.mxu0 0.0
    %846 = vmatprep.subr.mxu0 0.0
    %847 = vmatpush1.msra.mxu0 0.0
    %848 = vmatprep.subr.mxu0 0.0
    %849 = vmatpush1.msra.mxu0 0.0
    %850 = vmatprep.subr.mxu0 0.0
    %851 = vmatpush1.msra.mxu0 0.0
    %852 = vmatprep.subr.mxu0 0.0
    %853 = vmatpush1.msra.mxu0 0.0
    %854 = vmatprep.subr.mxu0 0.0
    %855 = vmatpush1.msra.mxu0 0.0
    %856 = vmatprep.subr.mxu0 0.0
    %857 = vmatpush1.msra.mxu0 0.0
    %858 = vmatprep.subr.mxu0 0.0
    %859 = vmatpush1.msra.mxu0 0.0
    %860 = vmatprep.mubr.f32.mxu0 0.0
    %861 = vmatmul.mubr.f32.gmra.mrb[0].mxu0 %v791
    %v862 = vpop.f32.mrb[0].mxu0
    %v863 = vadd.f32 0.0, %v862
    %v864 = vpop.f32.mrb[0].mxu0
    %865 = vmatprep.mubr.f32.mxu0 0.0
    %866 = vmatmul.mubr.f32.gmra.mrb[0].mxu0 %v794
    %v867 = vpop.f32.mrb[0].mxu0
    %v868 = vadd.f32 0.0, %v867
    %v869 = vpop.f32.mrb[0].mxu0
    %870 = vdwg.mxu0
    %872 = vrot.lane.b32.xlu0 %v20, 32
    %v873 = vpop.permute.xlu0 %872
    %v876 = vsel %vm126, %v375, 0
    %v879 = vsel %vm126, %v451, 0
    %881 = vmatprep.subr.mxu0 0.0
    %882 = vmatpush1.msra.mxu0 %v873
    %883 = vmatprep.subr.mxu0 0.0
    %884 = vmatpush1.msra.mxu0 0.0
    %885 = vmatprep.subr.mxu0 0.0
    %886 = vmatpush1.msra.mxu0 0.0
    %887 = vmatprep.subr.mxu0 0.0
    %888 = vmatpush1.msra.mxu0 0.0
    %889 = vmatprep.subr.mxu0 0.0
    %890 = vmatpush1.msra.mxu0 0.0
    %891 = vmatprep.subr.mxu0 0.0
    %892 = vmatpush1.msra.mxu0 0.0
    %893 = vmatprep.subr.mxu0 0.0
    %894 = vmatpush1.msra.mxu0 0.0
    %895 = vmatprep.subr.mxu0 0.0
    %896 = vmatpush1.msra.mxu0 0.0
    %897 = vmatprep.subr.mxu0 0.0
    %898 = vmatpush1.msra.mxu0 0.0
    %899 = vmatprep.subr.mxu0 0.0
    %900 = vmatpush1.msra.mxu0 0.0
    %901 = vmatprep.subr.mxu0 0.0
    %902 = vmatpush1.msra.mxu0 0.0
    %903 = vmatprep.subr.mxu0 0.0
    %904 = vmatpush1.msra.mxu0 0.0
    %905 = vmatprep.subr.mxu0 0.0
    %906 = vmatpush1.msra.mxu0 0.0
    %907 = vmatprep.subr.mxu0 0.0
    %908 = vmatpush1.msra.mxu0 0.0
    %909 = vmatprep.subr.mxu0 0.0
    %910 = vmatpush1.msra.mxu0 0.0
    %911 = vmatprep.subr.mxu0 0.0
    %912 = vmatpush1.msra.mxu0 0.0
    %913 = vmatprep.subr.mxu0 0.0
    %914 = vmatpush1.msra.mxu0 0.0
    %915 = vmatprep.subr.mxu0 0.0
    %916 = vmatpush1.msra.mxu0 0.0
    %917 = vmatprep.subr.mxu0 0.0
    %918 = vmatpush1.msra.mxu0 0.0
    %919 = vmatprep.subr.mxu0 0.0
    %920 = vmatpush1.msra.mxu0 0.0
    %921 = vmatprep.subr.mxu0 0.0
    %922 = vmatpush1.msra.mxu0 0.0
    %923 = vmatprep.subr.mxu0 0.0
    %924 = vmatpush1.msra.mxu0 0.0
    %925 = vmatprep.subr.mxu0 0.0
    %926 = vmatpush1.msra.mxu0 0.0
    %927 = vmatprep.subr.mxu0 0.0
    %928 = vmatpush1.msra.mxu0 0.0
    %929 = vmatprep.subr.mxu0 0.0
    %930 = vmatpush1.msra.mxu0 0.0
    %931 = vmatprep.subr.mxu0 0.0
    %932 = vmatpush1.msra.mxu0 0.0
    %933 = vmatprep.subr.mxu0 0.0
    %934 = vmatpush1.msra.mxu0 0.0
    %935 = vmatprep.subr.mxu0 0.0
    %936 = vmatpush1.msra.mxu0 0.0
    %937 = vmatprep.subr.mxu0 0.0
    %938 = vmatpush1.msra.mxu0 0.0
    %939 = vmatprep.subr.mxu0 0.0
    %940 = vmatpush1.msra.mxu0 0.0
    %941 = vmatprep.subr.mxu0 0.0
    %942 = vmatpush1.msra.mxu0 0.0
    %943 = vmatprep.subr.mxu0 0.0
    %944 = vmatpush1.msra.mxu0 0.0
    %945 = vmatprep.mubr.f32.mxu0 0.0
    %946 = vmatmul.mubr.f32.gmra.mrb[0].mxu0 %v876
    %v947 = vpop.f32.mrb[0].mxu0
    %v948 = vadd.f32 %v863, %v947
    %v949 = vpop.f32.mrb[0].mxu0
    %950 = vmatprep.mubr.f32.mxu0 0.0
    %951 = vmatmul.mubr.f32.gmra.mrb[0].mxu0 %v879
    %v952 = vpop.f32.mrb[0].mxu0
    %v953 = vadd.f32 %v868, %v952
    %v954 = vpop.f32.mrb[0].mxu0
    %955 = vdwg.mxu0
    %956 = vrot.lane.b32.xlu0 %v115, 112
    %v957 = vpop.permute.xlu0 %956
    %958 = vrot.lane.b32.xlu0 %v115, 80
    %v959 = vpop.permute.xlu0 %958
    %v960 = vsel %vm126, %v957, 0
    %v962 = vsel %vm126, %v959, 0
    %964 = vmatprep.subr.mxu0 0.0
    %965 = vmatpush1.xpose.msra.mxu0 %v962
    %966 = vmatprep.subr.mxu0 0.0
    %967 = vmatpush1.xpose.msra.mxu0 0.0
    %968 = vmatprep.subr.mxu0 0.0
    %969 = vmatpush1.xpose.msra.mxu0 0.0
    %970 = vmatprep.subr.mxu0 0.0
    %971 = vmatpush1.xpose.msra.mxu0 0.0
    %972 = vmatprep.subr.mxu0 0.0
    %973 = vmatpush1.xpose.msra.mxu0 0.0
    %974 = vmatprep.subr.mxu0 0.0
    %975 = vmatpush1.xpose.msra.mxu0 0.0
    %976 = vmatprep.subr.mxu0 0.0
    %977 = vmatpush1.xpose.msra.mxu0 0.0
    %978 = vmatprep.subr.mxu0 0.0
    %979 = vmatpush1.xpose.msra.mxu0 0.0
    %980 = vmatprep.subr.mxu0 0.0
    %981 = vmatpush1.xpose.msra.mxu0 0.0
    %982 = vmatprep.subr.mxu0 0.0
    %983 = vmatpush1.xpose.msra.mxu0 0.0
    %984 = vmatprep.subr.mxu0 0.0
    %985 = vmatpush1.xpose.msra.mxu0 0.0
    %986 = vmatprep.subr.mxu0 0.0
    %987 = vmatpush1.xpose.msra.mxu0 0.0
    %988 = vmatprep.subr.mxu0 0.0
    %989 = vmatpush1.xpose.msra.mxu0 0.0
    %990 = vmatprep.subr.mxu0 0.0
    %991 = vmatpush1.xpose.msra.mxu0 0.0
    %992 = vmatprep.subr.mxu0 0.0
    %993 = vmatpush1.xpose.msra.mxu0 0.0
    %994 = vmatprep.subr.mxu0 0.0
    %995 = vmatpush1.xpose.msra.mxu0 0.0
    %996 = vmatprep.subr.mxu0 0.0
    %997 = vmatpush1.xpose.msra.mxu0 0.0
    %998 = vmatprep.subr.mxu0 0.0
    %999 = vmatpush1.xpose.msra.mxu0 0.0
    %1000 = vmatprep.subr.mxu0 0.0
    %1001 = vmatpush1.xpose.msra.mxu0 0.0
    %1002 = vmatprep.subr.mxu0 0.0
    %1003 = vmatpush1.xpose.msra.mxu0 0.0
    %1004 = vmatprep.subr.mxu0 0.0
    %1005 = vmatpush1.xpose.msra.mxu0 0.0
    %1006 = vmatprep.subr.mxu0 0.0
    %1007 = vmatpush1.xpose.msra.mxu0 0.0
    %1008 = vmatprep.subr.mxu0 0.0
    %1009 = vmatpush1.xpose.msra.mxu0 0.0
    %1010 = vmatprep.subr.mxu0 0.0
    %1011 = vmatpush1.xpose.msra.mxu0 0.0
    %1012 = vmatprep.subr.mxu0 0.0
    %1013 = vmatpush1.xpose.msra.mxu0 0.0
    %1014 = vmatprep.subr.mxu0 0.0
    %1015 = vmatpush1.xpose.msra.mxu0 0.0
    %1016 = vmatprep.subr.mxu0 0.0
    %1017 = vmatpush1.xpose.msra.mxu0 0.0
    %1018 = vmatprep.subr.mxu0 0.0
    %1019 = vmatpush1.xpose.msra.mxu0 0.0
    %1020 = vmatprep.subr.mxu0 0.0
    %1021 = vmatpush1.xpose.msra.mxu0 0.0
    %1022 = vmatprep.subr.mxu0 0.0
    %1023 = vmatpush1.xpose.msra.mxu0 0.0
    %1024 = vmatprep.subr.mxu0 0.0
    %1025 = vmatpush1.xpose.msra.mxu0 0.0
    %1026 = vmatprep.subr.mxu0 0.0
    %1027 = vmatpush1.xpose.msra.mxu0 0.0
    %1028 = vmatprep.mubr.f32.mxu0 0.0
    %1029 = vmatmul.mubr.f32.gmra.mrb[0].mxu0 %v960
    %v1030 = vpop.f32.mrb[0].mxu0
    %v1031 = vadd.f32 0.0, %v1030
    %v1032 = vpop.f32.mrb[0].mxu0
    %1033 = vdwg.mxu0
    %1034 = vrot.lane.b32.xlu0 %v120, 112
    %v1035 = vpop.permute.xlu0 %1034
    %1036 = vrot.lane.b32.xlu0 %v120, 80
    %v1037 = vpop.permute.xlu0 %1036
    %v1038 = vsel %vm126, %v1035, 0
    %v1040 = vsel %vm126, %v1037, 0
    %1042 = vmatprep.subr.mxu0 0.0
    %1043 = vmatpush1.xpose.msra.mxu0 %v1040
    %1044 = vmatprep.subr.mxu0 0.0
    %1045 = vmatpush1.xpose.msra.mxu0 0.0
    %1046 = vmatprep.subr.mxu0 0.0
    %1047 = vmatpush1.xpose.msra.mxu0 0.0
    %1048 = vmatprep.subr.mxu0 0.0
    %1049 = vmatpush1.xpose.msra.mxu0 0.0
    %1050 = vmatprep.subr.mxu0 0.0
    %1051 = vmatpush1.xpose.msra.mxu0 0.0
    %1052 = vmatprep.subr.mxu0 0.0
    %1053 = vmatpush1.xpose.msra.mxu0 0.0
    %1054 = vmatprep.subr.mxu0 0.0
    %1055 = vmatpush1.xpose.msra.mxu0 0.0
    %1056 = vmatprep.subr.mxu0 0.0
    %1057 = vmatpush1.xpose.msra.mxu0 0.0
    %1058 = vmatprep.subr.mxu0 0.0
    %1059 = vmatpush1.xpose.msra.mxu0 0.0
    %1060 = vmatprep.subr.mxu0 0.0
    %1061 = vmatpush1.xpose.msra.mxu0 0.0
    %1062 = vmatprep.subr.mxu0 0.0
    %1063 = vmatpush1.xpose.msra.mxu0 0.0
    %1064 = vmatprep.subr.mxu0 0.0
    %1065 = vmatpush1.xpose.msra.mxu0 0.0
    %1066 = vmatprep.subr.mxu0 0.0
    %1067 = vmatpush1.xpose.msra.mxu0 0.0
    %1068 = vmatprep.subr.mxu0 0.0
    %1069 = vmatpush1.xpose.msra.mxu0 0.0
    %1070 = vmatprep.subr.mxu0 0.0
    %1071 = vmatpush1.xpose.msra.mxu0 0.0
    %1072 = vmatprep.subr.mxu0 0.0
    %1073 = vmatpush1.xpose.msra.mxu0 0.0
    %1074 = vmatprep.subr.mxu0 0.0
    %1075 = vmatpush1.xpose.msra.mxu0 0.0
    %1076 = vmatprep.subr.mxu0 0.0
    %1077 = vmatpush1.xpose.msra.mxu0 0.0
    %1078 = vmatprep.subr.mxu0 0.0
    %1079 = vmatpush1.xpose.msra.mxu0 0.0
    %1080 = vmatprep.subr.mxu0 0.0
    %1081 = vmatpush1.xpose.msra.mxu0 0.0
    %1082 = vmatprep.subr.mxu0 0.0
    %1083 = vmatpush1.xpose.msra.mxu0 0.0
    %1084 = vmatprep.subr.mxu0 0.0
    %1085 = vmatpush1.xpose.msra.mxu0 0.0
    %1086 = vmatprep.subr.mxu0 0.0
    %1087 = vmatpush1.xpose.msra.mxu0 0.0
    %1088 = vmatprep.subr.mxu0 0.0
    %1089 = vmatpush1.xpose.msra.mxu0 0.0
    %1090 = vmatprep.subr.mxu0 0.0
    %1091 = vmatpush1.xpose.msra.mxu0 0.0
    %1092 = vmatprep.subr.mxu0 0.0
    %1093 = vmatpush1.xpose.msra.mxu0 0.0
    %1094 = vmatprep.subr.mxu0 0.0
    %1095 = vmatpush1.xpose.msra.mxu0 0.0
    %1096 = vmatprep.subr.mxu0 0.0
    %1097 = vmatpush1.xpose.msra.mxu0 0.0
    %1098 = vmatprep.subr.mxu0 0.0
    %1099 = vmatpush1.xpose.msra.mxu0 0.0
    %1100 = vmatprep.subr.mxu0 0.0
    %1101 = vmatpush1.xpose.msra.mxu0 0.0
    %1102 = vmatprep.subr.mxu0 0.0
    %1103 = vmatpush1.xpose.msra.mxu0 0.0
    %1104 = vmatprep.subr.mxu0 0.0
    %1105 = vmatpush1.xpose.msra.mxu0 0.0
    %1106 = vmatprep.mubr.f32.mxu0 0.0
    %1107 = vmatmul.mubr.f32.gmra.mrb[0].mxu0 %v1038
    %v1108 = vpop.f32.mrb[0].mxu0
    %v1109 = vadd.f32 0.0, %v1108
    %v1110 = vpop.f32.mrb[0].mxu0
    %1111 = vdwg.mxu0
    %v1112 = vmul.f32 %v1031, 0.35355338
    %v1113 = vmul.f32 %v1109, 0.35355338
    %v1114 = vsel %vm126, %v1112, -inf
    %1115 = vmax.xlane.f32.xlu0 %v1114
    %v1116 = vpop.xlane.xlu0 %1115
    %v1117 = vsel %vm126, %v1113, -inf
    %1118 = vmax.xlane.f32.xlu0 %v1117
    %v1119 = vpop.xlane.xlu0 %1118
    %v1120 = vsub.f32 %v1112, %v1116
    %v1121 = vsub.f32 %v1113, %v1119
    %v1122 = vmul.f32 %v1120, 1.442695
    %v1123 = vpow.pop %v1122
    %v1124 = vmul.f32 %v1121, 1.442695
    %v1125 = vpow.pop %v1124
    %v1126 = vsel %vm126, %v1123, 0.0
    %1127 = vadd.xlane.f32.xlu0 %v1126
    %v1128 = vpop.xlane.xlu0 %1127
    %v1129 = vsel %vm126, %v1125, 0.0
    %1130 = vadd.xlane.f32.xlu0 %v1129
    %v1131 = vpop.xlane.xlu0 %1130
    %v1132 = vrcp.pop %v1128
    %v1133 = vrcp.pop %v1131
    %v1134 = vmul.f32 %v1123, %v1132
    %v1135 = vmul.f32 %v1125, %v1133
    %1136 = vrot.lane.b32.xlu0 %v115, 48
    %v1137 = vpop.permute.xlu0 %1136
    %v1140 = vsel %vm126, %v1134, 0
    %1142 = vmatprep.subr.mxu0 0.0
    %1143 = vmatpush1.msra.mxu0 %v1137
    %1144 = vmatprep.subr.mxu0 0.0
    %1145 = vmatpush1.msra.mxu0 0.0
    %1146 = vmatprep.subr.mxu0 0.0
    %1147 = vmatpush1.msra.mxu0 0.0
    %1148 = vmatprep.subr.mxu0 0.0
    %1149 = vmatpush1.msra.mxu0 0.0
    %1150 = vmatprep.subr.mxu0 0.0
    %1151 = vmatpush1.msra.mxu0 0.0
    %1152 = vmatprep.subr.mxu0 0.0
    %1153 = vmatpush1.msra.mxu0 0.0
    %1154 = vmatprep.subr.mxu0 0.0
    %1155 = vmatpush1.msra.mxu0 0.0
    %1156 = vmatprep.subr.mxu0 0.0
    %1157 = vmatpush1.msra.mxu0 0.0
    %1158 = vmatprep.subr.mxu0 0.0
    %1159 = vmatpush1.msra.mxu0 0.0
    %1160 = vmatprep.subr.mxu0 0.0
    %1161 = vmatpush1.msra.mxu0 0.0
    %1162 = vmatprep.subr.mxu0 0.0
    %1163 = vmatpush1.msra.mxu0 0.0
    %1164 = vmatprep.subr.mxu0 0.0
    %1165 = vmatpush1.msra.mxu0 0.0
    %1166 = vmatprep.subr.mxu0 0.0
    %1167 = vmatpush1.msra.mxu0 0.0
    %1168 = vmatprep.subr.mxu0 0.0
    %1169 = vmatpush1.msra.mxu0 0.0
    %1170 = vmatprep.subr.mxu0 0.0
    %1171 = vmatpush1.msra.mxu0 0.0
    %1172 = vmatprep.subr.mxu0 0.0
    %1173 = vmatpush1.msra.mxu0 0.0
    %1174 = vmatprep.subr.mxu0 0.0
    %1175 = vmatpush1.msra.mxu0 0.0
    %1176 = vmatprep.subr.mxu0 0.0
    %1177 = vmatpush1.msra.mxu0 0.0
    %1178 = vmatprep.subr.mxu0 0.0
    %1179 = vmatpush1.msra.mxu0 0.0
    %1180 = vmatprep.subr.mxu0 0.0
    %1181 = vmatpush1.msra.mxu0 0.0
    %1182 = vmatprep.subr.mxu0 0.0
    %1183 = vmatpush1.msra.mxu0 0.0
    %1184 = vmatprep.subr.mxu0 0.0
    %1185 = vmatpush1.msra.mxu0 0.0
    %1186 = vmatprep.subr.mxu0 0.0
    %1187 = vmatpush1.msra.mxu0 0.0
    %1188 = vmatprep.subr.mxu0 0.0
    %1189 = vmatpush1.msra.mxu0 0.0
    %1190 = vmatprep.subr.mxu0 0.0
    %1191 = vmatpush1.msra.mxu0 0.0
    %1192 = vmatprep.subr.mxu0 0.0
    %1193 = vmatpush1.msra.mxu0 0.0
    %1194 = vmatprep.subr.mxu0 0.0
    %1195 = vmatpush1.msra.mxu0 0.0
    %1196 = vmatprep.subr.mxu0 0.0
    %1197 = vmatpush1.msra.mxu0 0.0
    %1198 = vmatprep.subr.mxu0 0.0
    %1199 = vmatpush1.msra.mxu0 0.0
    %1200 = vmatprep.subr.mxu0 0.0
    %1201 = vmatpush1.msra.mxu0 0.0
    %1202 = vmatprep.subr.mxu0 0.0
    %1203 = vmatpush1.msra.mxu0 0.0
    %1204 = vmatprep.subr.mxu0 0.0
    %1205 = vmatpush1.msra.mxu0 0.0
    %1206 = vmatprep.mubr.f32.mxu0 0.0
    %1207 = vmatmul.mubr.f32.gmra.mrb[0].mxu0 %v1140
    %v1208 = vpop.f32.mrb[0].mxu0
    %v1209 = vadd.f32 0.0, %v1208
    %v1210 = vpop.f32.mrb[0].mxu0
    %1211 = vdwg.mxu0
    %1212 = vrot.lane.b32.xlu0 %v120, 48
    %v1213 = vpop.permute.xlu0 %1212
    %v1216 = vsel %vm126, %v1135, 0
    %1218 = vmatprep.subr.mxu0 0.0
    %1219 = vmatpush1.msra.mxu0 %v1213
    %1220 = vmatprep.subr.mxu0 0.0
    %1221 = vmatpush1.msra.mxu0 0.0
    %1222 = vmatprep.subr.mxu0 0.0
    %1223 = vmatpush1.msra.mxu0 0.0
    %1224 = vmatprep.subr.mxu0 0.0
    %1225 = vmatpush1.msra.mxu0 0.0
    %1226 = vmatprep.subr.mxu0 0.0
    %1227 = vmatpush1.msra.mxu0 0.0
    %1228 = vmatprep.subr.mxu0 0.0
    %1229 = vmatpush1.msra.mxu0 0.0
    %1230 = vmatprep.subr.mxu0 0.0
    %1231 = vmatpush1.msra.mxu0 0.0
    %1232 = vmatprep.subr.mxu0 0.0
    %1233 = vmatpush1.msra.mxu0 0.0
    %1234 = vmatprep.subr.mxu0 0.0
    %1235 = vmatpush1.msra.mxu0 0.0
    %1236 = vmatprep.subr.mxu0 0.0
    %1237 = vmatpush1.msra.mxu0 0.0
    %1238 = vmatprep.subr.mxu0 0.0
    %1239 = vmatpush1.msra.mxu0 0.0
    %1240 = vmatprep.subr.mxu0 0.0
    %1241 = vmatpush1.msra.mxu0 0.0
    %1242 = vmatprep.subr.mxu0 0.0
    %1243 = vmatpush1.msra.mxu0 0.0
    %1244 = vmatprep.subr.mxu0 0.0
    %1245 = vmatpush1.msra.mxu0 0.0
    %1246 = vmatprep.subr.mxu0 0.0
    %1247 = vmatpush1.msra.mxu0 0.0
    %1248 = vmatprep.subr.mxu0 0.0
    %1249 = vmatpush1.msra.mxu0 0.0
    %1250 = vmatprep.subr.mxu0 0.0
    %1251 = vmatpush1.msra.mxu0 0.0
    %1252 = vmatprep.subr.mxu0 0.0
    %1253 = vmatpush1.msra.mxu0 0.0
    %1254 = vmatprep.subr.mxu0 0.0
    %1255 = vmatpush1.msra.mxu0 0.0
    %1256 = vmatprep.subr.mxu0 0.0
    %1257 = vmatpush1.msra.mxu0 0.0
    %1258 = vmatprep.subr.mxu0 0.0
    %1259 = vmatpush1.msra.mxu0 0.0
    %1260 = vmatprep.subr.mxu0 0.0
    %1261 = vmatpush1.msra.mxu0 0.0
    %1262 = vmatprep.subr.mxu0 0.0
    %1263 = vmatpush1.msra.mxu0 0.0
    %1264 = vmatprep.subr.mxu0 0.0
    %1265 = vmatpush1.msra.mxu0 0.0
    %1266 = vmatprep.subr.mxu0 0.0
    %1267 = vmatpush1.msra.mxu0 0.0
    %1268 = vmatprep.subr.mxu0 0.0
    %1269 = vmatpush1.msra.mxu0 0.0
    %1270 = vmatprep.subr.mxu0 0.0
    %1271 = vmatpush1.msra.mxu0 0.0
    %1272 = vmatprep.subr.mxu0 0.0
    %1273 = vmatpush1.msra.mxu0 0.0
    %1274 = vmatprep.subr.mxu0 0.0
    %1275 = vmatpush1.msra.mxu0 0.0
    %1276 = vmatprep.subr.mxu0 0.0
    %1277 = vmatpush1.msra.mxu0 0.0
    %1278 = vmatprep.subr.mxu0 0.0
    %1279 = vmatpush1.msra.mxu0 0.0
    %1280 = vmatprep.subr.mxu0 0.0
    %1281 = vmatpush1.msra.mxu0 0.0
    %1282 = vmatprep.mubr.f32.mxu0 0.0
    %1283 = vmatmul.mubr.f32.gmra.mrb[0].mxu0 %v1216
    %v1284 = vpop.f32.mrb[0].mxu0
    %v1285 = vadd.f32 0.0, %v1284
    %v1286 = vpop.f32.mrb[0].mxu0
    %1287 = vdwg.mxu0
    %1289 = vrot.lane.b32.xlu0 %v24, 32
    %v1290 = vpop.permute.xlu0 %1289
    %v1293 = vsel %vm126, %v1209, 0
    %v1296 = vsel %vm126, %v1285, 0
    %1298 = vmatprep.subr.mxu0 0.0
    %1299 = vmatpush1.msra.mxu0 %v1290
    %1300 = vmatprep.subr.mxu0 0.0
    %1301 = vmatpush1.msra.mxu0 0.0
    %1302 = vmatprep.subr.mxu0 0.0
    %1303 = vmatpush1.msra.mxu0 0.0
    %1304 = vmatprep.subr.mxu0 0.0
    %1305 = vmatpush1.msra.mxu0 0.0
    %1306 = vmatprep.subr.mxu0 0.0
    %1307 = vmatpush1.msra.mxu0 0.0
    %1308 = vmatprep.subr.mxu0 0.0
    %1309 = vmatpush1.msra.mxu0 0.0
    %1310 = vmatprep.subr.mxu0 0.0
    %1311 = vmatpush1.msra.mxu0 0.0
    %1312 = vmatprep.subr.mxu0 0.0
    %1313 = vmatpush1.msra.mxu0 0.0
    %1314 = vmatprep.subr.mxu0 0.0
    %1315 = vmatpush1.msra.mxu0 0.0
    %1316 = vmatprep.subr.mxu0 0.0
    %1317 = vmatpush1.msra.mxu0 0.0
    %1318 = vmatprep.subr.mxu0 0.0
    %1319 = vmatpush1.msra.mxu0 0.0
    %1320 = vmatprep.subr.mxu0 0.0
    %1321 = vmatpush1.msra.mxu0 0.0
    %1322 = vmatprep.subr.mxu0 0.0
    %1323 = vmatpush1.msra.mxu0 0.0
    %1324 = vmatprep.subr.mxu0 0.0
    %1325 = vmatpush1.msra.mxu0 0.0
    %1326 = vmatprep.subr.mxu0 0.0
    %1327 = vmatpush1.msra.mxu0 0.0
    %1328 = vmatprep.subr.mxu0 0.0
    %1329 = vmatpush1.msra.mxu0 0.0
    %1330 = vmatprep.subr.mxu0 0.0
    %1331 = vmatpush1.msra.mxu0 0.0
    %1332 = vmatprep.subr.mxu0 0.0
    %1333 = vmatpush1.msra.mxu0 0.0
    %1334 = vmatprep.subr.mxu0 0.0
    %1335 = vmatpush1.msra.mxu0 0.0
    %1336 = vmatprep.subr.mxu0 0.0
    %1337 = vmatpush1.msra.mxu0 0.0
    %1338 = vmatprep.subr.mxu0 0.0
    %1339 = vmatpush1.msra.mxu0 0.0
    %1340 = vmatprep.subr.mxu0 0.0
    %1341 = vmatpush1.msra.mxu0 0.0
    %1342 = vmatprep.subr.mxu0 0.0
    %1343 = vmatpush1.msra.mxu0 0.0
    %1344 = vmatprep.subr.mxu0 0.0
    %1345 = vmatpush1.msra.mxu0 0.0
    %1346 = vmatprep.subr.mxu0 0.0
    %1347 = vmatpush1.msra.mxu0 0.0
    %1348 = vmatprep.subr.mxu0 0.0
    %1349 = vmatpush1.msra.mxu0 0.0
    %1350 = vmatprep.subr.mxu0 0.0
    %1351 = vmatpush1.msra.mxu0 0.0
    %1352 = vmatprep.subr.mxu0 0.0
    %1353 = vmatpush1.msra.mxu0 0.0
    %1354 = vmatprep.subr.mxu0 0.0
    %1355 = vmatpush1.msra.mxu0 0.0
    %1356 = vmatprep.subr.mxu0 0.0
    %1357 = vmatpush1.msra.mxu0 0.0
    %1358 = vmatprep.subr.mxu0 0.0
    %1359 = vmatpush1.msra.mxu0 0.0
    %1360 = vmatprep.subr.mxu0 0.0
    %1361 = vmatpush1.msra.mxu0 0.0
    %1362 = vmatprep.mubr.f32.mxu0 0.0
    %1363 = vmatmul.mubr.f32.gmra.mrb[0].mxu0 %v1293
    %v1364 = vpop.f32.mrb[0].mxu0
    %v1365 = vadd.f32 0.0, %v1364
    %v1366 = vpop.f32.mrb[0].mxu0
    %1367 = vmatprep.mubr.f32.mxu0 0.0
    %1368 = vmatmul.mubr.f32.gmra.mrb[0].mxu0 %v1296
    %v1369 = vpop.f32.mrb[0].mxu0
    %v1370 = vadd.f32 0.0, %v1369
    %v1371 = vpop.f32.mrb[0].mxu0
    %1372 = vdwg.mxu0
    %v1373 = vadd.f32 %v948, %v1365
    %v1374 = vadd.f32 %v953, %v1370
    %1375 = vrot.lane.b32.xlu0 %v115, 104
    %v1376 = vpop.permute.xlu0 %1375
    %1377 = vrot.lane.b32.xlu0 %v115, 72
    %v1378 = vpop.permute.xlu0 %1377
    %v1379 = vsel %vm126, %v1376, 0
    %v1381 = vsel %vm126, %v1378, 0
    %1383 = vmatprep.subr.mxu0 0.0
    %1384 = vmatpush1.xpose.msra.mxu0 %v1381
    %1385 = vmatprep.subr.mxu0 0.0
    %1386 = vmatpush1.xpose.msra.mxu0 0.0
    %1387 = vmatprep.subr.mxu0 0.0
    %1388 = vmatpush1.xpose.msra.mxu0 0.0
    %1389 = vmatprep.subr.mxu0 0.0
    %1390 = vmatpush1.xpose.msra.mxu0 0.0
    %1391 = vmatprep.subr.mxu0 0.0
    %1392 = vmatpush1.xpose.msra.mxu0 0.0
    %1393 = vmatprep.subr.mxu0 0.0
    %1394 = vmatpush1.xpose.msra.mxu0 0.0
    %1395 = vmatprep.subr.mxu0 0.0
    %1396 = vmatpush1.xpose.msra.mxu0 0.0
    %1397 = vmatprep.subr.mxu0 0.0
    %1398 = vmatpush1.xpose.msra.mxu0 0.0
    %1399 = vmatprep.subr.mxu0 0.0
    %1400 = vmatpush1.xpose.msra.mxu0 0.0
    %1401 = vmatprep.subr.mxu0 0.0
    %1402 = vmatpush1.xpose.msra.mxu0 0.0
    %1403 = vmatprep.subr.mxu0 0.0
    %1404 = vmatpush1.xpose.msra.mxu0 0.0
    %1405 = vmatprep.subr.mxu0 0.0
    %1406 = vmatpush1.xpose.msra.mxu0 0.0
    %1407 = vmatprep.subr.mxu0 0.0
    %1408 = vmatpush1.xpose.msra.mxu0 0.0
    %1409 = vmatprep.subr.mxu0 0.0
    %1410 = vmatpush1.xpose.msra.mxu0 0.0
    %1411 = vmatprep.subr.mxu0 0.0
    %1412 = vmatpush1.xpose.msra.mxu0 0.0
    %1413 = vmatprep.subr.mxu0 0.0
    %1414 = vmatpush1.xpose.msra.mxu0 0.0
    %1415 = vmatprep.subr.mxu0 0.0
    %1416 = vmatpush1.xpose.msra.mxu0 0.0
    %1417 = vmatprep.subr.mxu0 0.0
    %1418 = vmatpush1.xpose.msra.mxu0 0.0
    %1419 = vmatprep.subr.mxu0 0.0
    %1420 = vmatpush1.xpose.msra.mxu0 0.0
    %1421 = vmatprep.subr.mxu0 0.0
    %1422 = vmatpush1.xpose.msra.mxu0 0.0
    %1423 = vmatprep.subr.mxu0 0.0
    %1424 = vmatpush1.xpose.msra.mxu0 0.0
    %1425 = vmatprep.subr.mxu0 0.0
    %1426 = vmatpush1.xpose.msra.mxu0 0.0
    %1427 = vmatprep.subr.mxu0 0.0
    %1428 = vmatpush1.xpose.msra.mxu0 0.0
    %1429 = vmatprep.subr.mxu0 0.0
    %1430 = vmatpush1.xpose.msra.mxu0 0.0
    %1431 = vmatprep.subr.mxu0 0.0
    %1432 = vmatpush1.xpose.msra.mxu0 0.0
    %1433 = vmatprep.subr.mxu0 0.0
    %1434 = vmatpush1.xpose.msra.mxu0 0.0
    %1435 = vmatprep.subr.mxu0 0.0
    %1436 = vmatpush1.xpose.msra.mxu0 0.0
    %1437 = vmatprep.subr.mxu0 0.0
    %1438 = vmatpush1.xpose.msra.mxu0 0.0
    %1439 = vmatprep.subr.mxu0 0.0
    %1440 = vmatpush1.xpose.msra.mxu0 0.0
    %1441 = vmatprep.subr.mxu0 0.0
    %1442 = vmatpush1.xpose.msra.mxu0 0.0
    %1443 = vmatprep.subr.mxu0 0.0
    %1444 = vmatpush1.xpose.msra.mxu0 0.0
    %1445 = vmatprep.subr.mxu0 0.0
    %1446 = vmatpush1.xpose.msra.mxu0 0.0
    %1447 = vmatprep.mubr.f32.mxu0 0.0
    %1448 = vmatmul.mubr.f32.gmra.mrb[0].mxu0 %v1379
    %v1449 = vpop.f32.mrb[0].mxu0
    %v1450 = vadd.f32 0.0, %v1449
    %v1451 = vpop.f32.mrb[0].mxu0
    %1452 = vdwg.mxu0
    %1453 = vrot.lane.b32.xlu0 %v120, 104
    %v1454 = vpop.permute.xlu0 %1453
    %1455 = vrot.lane.b32.xlu0 %v120, 72
    %v1456 = vpop.permute.xlu0 %1455
    %v1457 = vsel %vm126, %v1454, 0
    %v1459 = vsel %vm126, %v1456, 0
    %1461 = vmatprep.subr.mxu0 0.0
    %1462 = vmatpush1.xpose.msra.mxu0 %v1459
    %1463 = vmatprep.subr.mxu0 0.0
    %1464 = vmatpush1.xpose.msra.mxu0 0.0
    %1465 = vmatprep.subr.mxu0 0.0
    %1466 = vmatpush1.xpose.msra.mxu0 0.0
    %1467 = vmatprep.subr.mxu0 0.0
    %1468 = vmatpush1.xpose.msra.mxu0 0.0
    %1469 = vmatprep.subr.mxu0 0.0
    %1470 = vmatpush1.xpose.msra.mxu0 0.0
    %1471 = vmatprep.subr.mxu0 0.0
    %1472 = vmatpush1.xpose.msra.mxu0 0.0
    %1473 = vmatprep.subr.mxu0 0.0
    %1474 = vmatpush1.xpose.msra.mxu0 0.0
    %1475 = vmatprep.subr.mxu0 0.0
    %1476 = vmatpush1.xpose.msra.mxu0 0.0
    %1477 = vmatprep.subr.mxu0 0.0
    %1478 = vmatpush1.xpose.msra.mxu0 0.0
    %1479 = vmatprep.subr.mxu0 0.0
    %1480 = vmatpush1.xpose.msra.mxu0 0.0
    %1481 = vmatprep.subr.mxu0 0.0
    %1482 = vmatpush1.xpose.msra.mxu0 0.0
    %1483 = vmatprep.subr.mxu0 0.0
    %1484 = vmatpush1.xpose.msra.mxu0 0.0
    %1485 = vmatprep.subr.mxu0 0.0
    %1486 = vmatpush1.xpose.msra.mxu0 0.0
    %1487 = vmatprep.subr.mxu0 0.0
    %1488 = vmatpush1.xpose.msra.mxu0 0.0
    %1489 = vmatprep.subr.mxu0 0.0
    %1490 = vmatpush1.xpose.msra.mxu0 0.0
    %1491 = vmatprep.subr.mxu0 0.0
    %1492 = vmatpush1.xpose.msra.mxu0 0.0
    %1493 = vmatprep.subr.mxu0 0.0
    %1494 = vmatpush1.xpose.msra.mxu0 0.0
    %1495 = vmatprep.subr.mxu0 0.0
    %1496 = vmatpush1.xpose.msra.mxu0 0.0
    %1497 = vmatprep.subr.mxu0 0.0
    %1498 = vmatpush1.xpose.msra.mxu0 0.0
    %1499 = vmatprep.subr.mxu0 0.0
    %1500 = vmatpush1.xpose.msra.mxu0 0.0
    %1501 = vmatprep.subr.mxu0 0.0
    %1502 = vmatpush1.xpose.msra.mxu0 0.0
    %1503 = vmatprep.subr.mxu0 0.0
    %1504 = vmatpush1.xpose.msra.mxu0 0.0
    %1505 = vmatprep.subr.mxu0 0.0
    %1506 = vmatpush1.xpose.msra.mxu0 0.0
    %1507 = vmatprep.subr.mxu0 0.0
    %1508 = vmatpush1.xpose.msra.mxu0 0.0
    %1509 = vmatprep.subr.mxu0 0.0
    %1510 = vmatpush1.xpose.msra.mxu0 0.0
    %1511 = vmatprep.subr.mxu0 0.0
    %1512 = vmatpush1.xpose.msra.mxu0 0.0
    %1513 = vmatprep.subr.mxu0 0.0
    %1514 = vmatpush1.xpose.msra.mxu0 0.0
    %1515 = vmatprep.subr.mxu0 0.0
    %1516 = vmatpush1.xpose.msra.mxu0 0.0
    %1517 = vmatprep.subr.mxu0 0.0
    %1518 = vmatpush1.xpose.msra.mxu0 0.0
    %1519 = vmatprep.subr.mxu0 0.0
    %1520 = vmatpush1.xpose.msra.mxu0 0.0
    %1521 = vmatprep.subr.mxu0 0.0
    %1522 = vmatpush1.xpose.msra.mxu0 0.0
    %1523 = vmatprep.subr.mxu0 0.0
    %1524 = vmatpush1.xpose.msra.mxu0 0.0
    %1525 = vmatprep.mubr.f32.mxu0 0.0
    %1526 = vmatmul.mubr.f32.gmra.mrb[0].mxu0 %v1457
    %v1527 = vpop.f32.mrb[0].mxu0
    %v1528 = vadd.f32 0.0, %v1527
    %v1529 = vpop.f32.mrb[0].mxu0
    %1530 = vdwg.mxu0
    %v1531 = vmul.f32 %v1450, 0.35355338
    %v1532 = vmul.f32 %v1528, 0.35355338
    %v1533 = vsel %vm126, %v1531, -inf
    %1534 = vmax.xlane.f32.xlu0 %v1533
    %v1535 = vpop.xlane.xlu0 %1534
    %v1536 = vsel %vm126, %v1532, -inf
    %1537 = vmax.xlane.f32.xlu0 %v1536
    %v1538 = vpop.xlane.xlu0 %1537
    %v1539 = vsub.f32 %v1531, %v1535
    %v1540 = vsub.f32 %v1532, %v1538
    %v1541 = vmul.f32 %v1539, 1.442695
    %v1542 = vpow.pop %v1541
    %v1543 = vmul.f32 %v1540, 1.442695
    %v1544 = vpow.pop %v1543
    %v1545 = vsel %vm126, %v1542, 0.0
    %1546 = vadd.xlane.f32.xlu0 %v1545
    %v1547 = vpop.xlane.xlu0 %1546
    %v1548 = vsel %vm126, %v1544, 0.0
    %1549 = vadd.xlane.f32.xlu0 %v1548
    %v1550 = vpop.xlane.xlu0 %1549
    %v1551 = vrcp.pop %v1547
    %v1552 = vrcp.pop %v1550
    %v1553 = vmul.f32 %v1542, %v1551
    %v1554 = vmul.f32 %v1544, %v1552
    %1555 = vrot.lane.b32.xlu0 %v115, 40
    %v1556 = vpop.permute.xlu0 %1555
    %v1559 = vsel %vm126, %v1553, 0
    %1561 = vmatprep.subr.mxu0 0.0
    %1562 = vmatpush1.msra.mxu0 %v1556
    %1563 = vmatprep.subr.mxu0 0.0
    %1564 = vmatpush1.msra.mxu0 0.0
    %1565 = vmatprep.subr.mxu0 0.0
    %1566 = vmatpush1.msra.mxu0 0.0
    %1567 = vmatprep.subr.mxu0 0.0
    %1568 = vmatpush1.msra.mxu0 0.0
    %1569 = vmatprep.subr.mxu0 0.0
    %1570 = vmatpush1.msra.mxu0 0.0
    %1571 = vmatprep.subr.mxu0 0.0
    %1572 = vmatpush1.msra.mxu0 0.0
    %1573 = vmatprep.subr.mxu0 0.0
    %1574 = vmatpush1.msra.mxu0 0.0
    %1575 = vmatprep.subr.mxu0 0.0
    %1576 = vmatpush1.msra.mxu0 0.0
    %1577 = vmatprep.subr.mxu0 0.0
    %1578 = vmatpush1.msra.mxu0 0.0
    %1579 = vmatprep.subr.mxu0 0.0
    %1580 = vmatpush1.msra.mxu0 0.0
    %1581 = vmatprep.subr.mxu0 0.0
    %1582 = vmatpush1.msra.mxu0 0.0
    %1583 = vmatprep.subr.mxu0 0.0
    %1584 = vmatpush1.msra.mxu0 0.0
    %1585 = vmatprep.subr.mxu0 0.0
    %1586 = vmatpush1.msra.mxu0 0.0
    %1587 = vmatprep.subr.mxu0 0.0
    %1588 = vmatpush1.msra.mxu0 0.0
    %1589 = vmatprep.subr.mxu0 0.0
    %1590 = vmatpush1.msra.mxu0 0.0
    %1591 = vmatprep.subr.mxu0 0.0
    %1592 = vmatpush1.msra.mxu0 0.0
    %1593 = vmatprep.subr.mxu0 0.0
    %1594 = vmatpush1.msra.mxu0 0.0
    %1595 = vmatprep.subr.mxu0 0.0
    %1596 = vmatpush1.msra.mxu0 0.0
    %1597 = vmatprep.subr.mxu0 0.0
    %1598 = vmatpush1.msra.mxu0 0.0
    %1599 = vmatprep.subr.mxu0 0.0
    %1600 = vmatpush1.msra.mxu0 0.0
    %1601 = vmatprep.subr.mxu0 0.0
    %1602 = vmatpush1.msra.mxu0 0.0
    %1603 = vmatprep.subr.mxu0 0.0
    %1604 = vmatpush1.msra.mxu0 0.0
    %1605 = vmatprep.subr.mxu0 0.0
    %1606 = vmatpush1.msra.mxu0 0.0
    %1607 = vmatprep.subr.mxu0 0.0
    %1608 = vmatpush1.msra.mxu0 0.0
    %1609 = vmatprep.subr.mxu0 0.0
    %1610 = vmatpush1.msra.mxu0 0.0
    %1611 = vmatprep.subr.mxu0 0.0
    %1612 = vmatpush1.msra.mxu0 0.0
    %1613 = vmatprep.subr.mxu0 0.0
    %1614 = vmatpush1.msra.mxu0 0.0
    %1615 = vmatprep.subr.mxu0 0.0
    %1616 = vmatpush1.msra.mxu0 0.0
    %1617 = vmatprep.subr.mxu0 0.0
    %1618 = vmatpush1.msra.mxu0 0.0
    %1619 = vmatprep.subr.mxu0 0.0
    %1620 = vmatpush1.msra.mxu0 0.0
    %1621 = vmatprep.subr.mxu0 0.0
    %1622 = vmatpush1.msra.mxu0 0.0
    %1623 = vmatprep.subr.mxu0 0.0
    %1624 = vmatpush1.msra.mxu0 0.0
    %1625 = vmatprep.mubr.f32.mxu0 0.0
    %1626 = vmatmul.mubr.f32.gmra.mrb[0].mxu0 %v1559
    %v1627 = vpop.f32.mrb[0].mxu0
    %v1628 = vadd.f32 0.0, %v1627
    %v1629 = vpop.f32.mrb[0].mxu0
    %1630 = vdwg.mxu0
    %1631 = vrot.lane.b32.xlu0 %v120, 40
    %v1632 = vpop.permute.xlu0 %1631
    %v1635 = vsel %vm126, %v1554, 0
    %1637 = vmatprep.subr.mxu0 0.0
    %1638 = vmatpush1.msra.mxu0 %v1632
    %1639 = vmatprep.subr.mxu0 0.0
    %1640 = vmatpush1.msra.mxu0 0.0
    %1641 = vmatprep.subr.mxu0 0.0
    %1642 = vmatpush1.msra.mxu0 0.0
    %1643 = vmatprep.subr.mxu0 0.0
    %1644 = vmatpush1.msra.mxu0 0.0
    %1645 = vmatprep.subr.mxu0 0.0
    %1646 = vmatpush1.msra.mxu0 0.0
    %1647 = vmatprep.subr.mxu0 0.0
    %1648 = vmatpush1.msra.mxu0 0.0
    %1649 = vmatprep.subr.mxu0 0.0
    %1650 = vmatpush1.msra.mxu0 0.0
    %1651 = vmatprep.subr.mxu0 0.0
    %1652 = vmatpush1.msra.mxu0 0.0
    %1653 = vmatprep.subr.mxu0 0.0
    %1654 = vmatpush1.msra.mxu0 0.0
    %1655 = vmatprep.subr.mxu0 0.0
    %1656 = vmatpush1.msra.mxu0 0.0
    %1657 = vmatprep.subr.mxu0 0.0
    %1658 = vmatpush1.msra.mxu0 0.0
    %1659 = vmatprep.subr.mxu0 0.0
    %1660 = vmatpush1.msra.mxu0 0.0
    %1661 = vmatprep.subr.mxu0 0.0
    %1662 = vmatpush1.msra.mxu0 0.0
    %1663 = vmatprep.subr.mxu0 0.0
    %1664 = vmatpush1.msra.mxu0 0.0
    %1665 = vmatprep.subr.mxu0 0.0
    %1666 = vmatpush1.msra.mxu0 0.0
    %1667 = vmatprep.subr.mxu0 0.0
    %1668 = vmatpush1.msra.mxu0 0.0
    %1669 = vmatprep.subr.mxu0 0.0
    %1670 = vmatpush1.msra.mxu0 0.0
    %1671 = vmatprep.subr.mxu0 0.0
    %1672 = vmatpush1.msra.mxu0 0.0
    %1673 = vmatprep.subr.mxu0 0.0
    %1674 = vmatpush1.msra.mxu0 0.0
    %1675 = vmatprep.subr.mxu0 0.0
    %1676 = vmatpush1.msra.mxu0 0.0
    %1677 = vmatprep.subr.mxu0 0.0
    %1678 = vmatpush1.msra.mxu0 0.0
    %1679 = vmatprep.subr.mxu0 0.0
    %1680 = vmatpush1.msra.mxu0 0.0
    %1681 = vmatprep.subr.mxu0 0.0
    %1682 = vmatpush1.msra.mxu0 0.0
    %1683 = vmatprep.subr.mxu0 0.0
    %1684 = vmatpush1.msra.mxu0 0.0
    %1685 = vmatprep.subr.mxu0 0.0
    %1686 = vmatpush1.msra.mxu0 0.0
    %1687 = vmatprep.subr.mxu0 0.0
    %1688 = vmatpush1.msra.mxu0 0.0
    %1689 = vmatprep.subr.mxu0 0.0
    %1690 = vmatpush1.msra.mxu0 0.0
    %1691 = vmatprep.subr.mxu0 0.0
    %1692 = vmatpush1.msra.mxu0 0.0
    %1693 = vmatprep.subr.mxu0 0.0
    %1694 = vmatpush1.msra.mxu0 0.0
    %1695 = vmatprep.subr.mxu0 0.0
    %1696 = vmatpush1.msra.mxu0 0.0
    %1697 = vmatprep.subr.mxu0 0.0
    %1698 = vmatpush1.msra.mxu0 0.0
    %1699 = vmatprep.subr.mxu0 0.0
    %1700 = vmatpush1.msra.mxu0 0.0
    %1701 = vmatprep.mubr.f32.mxu0 0.0
    %1702 = vmatmul.mubr.f32.gmra.mrb[0].mxu0 %v1635
    %v1703 = vpop.f32.mrb[0].mxu0
    %v1704 = vadd.f32 0.0, %v1703
    %v1705 = vpop.f32.mrb[0].mxu0
    %1706 = vdwg.mxu0
    %1708 = vrot.lane.b32.xlu0 %v26, 32
    %v1709 = vpop.permute.xlu0 %1708
    %v1712 = vsel %vm126, %v1628, 0
    %v1715 = vsel %vm126, %v1704, 0
    %1717 = vmatprep.subr.mxu0 0.0
    %1718 = vmatpush1.msra.mxu0 %v1709
    %1719 = vmatprep.subr.mxu0 0.0
    %1720 = vmatpush1.msra.mxu0 0.0
    %1721 = vmatprep.subr.mxu0 0.0
    %1722 = vmatpush1.msra.mxu0 0.0
    %1723 = vmatprep.subr.mxu0 0.0
    %1724 = vmatpush1.msra.mxu0 0.0
    %1725 = vmatprep.subr.mxu0 0.0
    %1726 = vmatpush1.msra.mxu0 0.0
    %1727 = vmatprep.subr.mxu0 0.0
    %1728 = vmatpush1.msra.mxu0 0.0
    %1729 = vmatprep.subr.mxu0 0.0
    %1730 = vmatpush1.msra.mxu0 0.0
    %1731 = vmatprep.subr.mxu0 0.0
    %1732 = vmatpush1.msra.mxu0 0.0
    %1733 = vmatprep.subr.mxu0 0.0
    %1734 = vmatpush1.msra.mxu0 0.0
    %1735 = vmatprep.subr.mxu0 0.0
    %1736 = vmatpush1.msra.mxu0 0.0
    %1737 = vmatprep.subr.mxu0 0.0
    %1738 = vmatpush1.msra.mxu0 0.0
    %1739 = vmatprep.subr.mxu0 0.0
    %1740 = vmatpush1.msra.mxu0 0.0
    %1741 = vmatprep.subr.mxu0 0.0
    %1742 = vmatpush1.msra.mxu0 0.0
    %1743 = vmatprep.subr.mxu0 0.0
    %1744 = vmatpush1.msra.mxu0 0.0
    %1745 = vmatprep.subr.mxu0 0.0
    %1746 = vmatpush1.msra.mxu0 0.0
    %1747 = vmatprep.subr.mxu0 0.0
    %1748 = vmatpush1.msra.mxu0 0.0
    %1749 = vmatprep.subr.mxu0 0.0
    %1750 = vmatpush1.msra.mxu0 0.0
    %1751 = vmatprep.subr.mxu0 0.0
    %1752 = vmatpush1.msra.mxu0 0.0
    %1753 = vmatprep.subr.mxu0 0.0
    %1754 = vmatpush1.msra.mxu0 0.0
    %1755 = vmatprep.subr.mxu0 0.0
    %1756 = vmatpush1.msra.mxu0 0.0
    %1757 = vmatprep.subr.mxu0 0.0
    %1758 = vmatpush1.msra.mxu0 0.0
    %1759 = vmatprep.subr.mxu0 0.0
    %1760 = vmatpush1.msra.mxu0 0.0
    %1761 = vmatprep.subr.mxu0 0.0
    %1762 = vmatpush1.msra.mxu0 0.0
    %1763 = vmatprep.subr.mxu0 0.0
    %1764 = vmatpush1.msra.mxu0 0.0
    %1765 = vmatprep.subr.mxu0 0.0
    %1766 = vmatpush1.msra.mxu0 0.0
    %1767 = vmatprep.subr.mxu0 0.0
    %1768 = vmatpush1.msra.mxu0 0.0
    %1769 = vmatprep.subr.mxu0 0.0
    %1770 = vmatpush1.msra.mxu0 0.0
    %1771 = vmatprep.subr.mxu0 0.0
    %1772 = vmatpush1.msra.mxu0 0.0
    %1773 = vmatprep.subr.mxu0 0.0
    %1774 = vmatpush1.msra.mxu0 0.0
    %1775 = vmatprep.subr.mxu0 0.0
    %1776 = vmatpush1.msra.mxu0 0.0
    %1777 = vmatprep.subr.mxu0 0.0
    %1778 = vmatpush1.msra.mxu0 0.0
    %1779 = vmatprep.subr.mxu0 0.0
    %1780 = vmatpush1.msra.mxu0 0.0
    %1781 = vmatprep.mubr.f32.mxu0 0.0
    %1782 = vmatmul.mubr.f32.gmra.mrb[0].mxu0 %v1712
    %v1783 = vpop.f32.mrb[0].mxu0
    %v1784 = vadd.f32 0.0, %v1783
    %v1785 = vpop.f32.mrb[0].mxu0
    %1786 = vmatprep.mubr.f32.mxu0 0.0
    %1787 = vmatmul.mubr.f32.gmra.mrb[0].mxu0 %v1715
    %v1788 = vpop.f32.mrb[0].mxu0
    %v1789 = vadd.f32 0.0, %v1788
    %v1790 = vpop.f32.mrb[0].mxu0
    %1791 = vdwg.mxu0
    %v1792 = vadd.f32 %v1373, %v1784
    %v1793 = vadd.f32 %v1374, %v1789
    %v1794 = vlaneseq
    %v1795 = vshrl.u32 %v1794, 7
    %v1796 = vsub.s32 1, %v1795
    %v1797 = vrot.slane %v36, %v1796
    %v1798 = vadd.f32 %v1792, %v1797
    %v1799 = vadd.f32 %v1793, %v1797
    %v1800 = vadd.f32 %v1798, %v18
    %v1801 = vadd.f32 %v1799, %v19
    %v1802 = vsel %vm41, %v1800, 0.0
    %1803 = vadd.xlane.f32.xlu0 %v1802
    %v1804 = vpop.xlane.xlu0 %1803
    %v1805 = vsel %vm41, %v1801, 0.0
    %1806 = vadd.xlane.f32.xlu0 %v1805
    %v1807 = vpop.xlane.xlu0 %1806
    %v1808 = vrcp.pop 32.0
    %v1809 = vmul.f32 %v1804, %v1808
    %v1810 = vmul.f32 %v1807, %v1808
    %v1811 = vsub.f32 %v1800, %v1809
    %v1812 = vsub.f32 %v1801, %v1810
    %v1813 = vmul.f32 %v1811, %v1811
    %v1814 = vmul.f32 %v1812, %v1812
    %v1815 = vsel %vm41, %v1813, 0.0
    %1816 = vadd.xlane.f32.xlu0 %v1815
    %v1817 = vpop.xlane.xlu0 %1816
    %v1818 = vsel %vm41, %v1814, 0.0
    %1819 = vadd.xlane.f32.xlu0 %v1818
    %v1820 = vpop.xlane.xlu0 %1819
    %v1821 = vmul.f32 %v1817, %v1808
    %v1822 = vmul.f32 %v1820, %v1808
    %v1823 = vadd.f32 %v1821, 1e-06
    %v1824 = vadd.f32 %v1822, 1e-06
    %v1825 = vrsqrt.pop %v1823
    %v1826 = vrsqrt.pop %v1824
    %v1827 = vmul.f32 %v1811, %v1825
    %v1828 = vmul.f32 %v1812, %v1826
    %v1829 = vlaneseq
    %v1830 = vshrl.u32 %v1829, 7
    %v1831 = vsub.s32 2, %v1830
    %v1832 = vrot.slane %v36, %v1831
    %v1833 = vmul.f32 %v1827, %v1832
    %v1834 = vmul.f32 %v1828, %v1832
    %v1835 = vlaneseq
    %v1836 = vshrl.u32 %v1835, 7
    %v1837 = vsub.s32 3, %v1836
    %v1838 = vrot.slane %v36, %v1837
    %v1839 = vadd.f32 %v1833, %v1838
    %v1840 = vadd.f32 %v1834, %v1838
    %v1841 = vlaneseq
    %v1842 = vshrl.u32 %v1841, 7
    %v1843 = vsub.s32 4, %v1842
    %v1844 = vrot.slane %v36, %v1843
    %v1846 = vsel %vm41, %v1839, 0
    %v1849 = vsel %vm41, %v1840, 0
    %1851 = vmatprep.subr.mxu0 0.0
    %1852 = vmatpush1.msra.mxu0 %v21
    %1853 = vmatprep.subr.mxu0 0.0
    %1854 = vmatpush1.msra.mxu0 %v23
    %1855 = vmatprep.subr.mxu0 0.0
    %1856 = vmatpush1.msra.mxu0 %v25
    %1857 = vmatprep.subr.mxu0 0.0
    %1858 = vmatpush1.msra.mxu0 %v27
    %1859 = vmatprep.subr.mxu0 0.0
    %1860 = vmatpush1.msra.mxu0 0.0
    %1861 = vmatprep.subr.mxu0 0.0
    %1862 = vmatpush1.msra.mxu0 0.0
    %1863 = vmatprep.subr.mxu0 0.0
    %1864 = vmatpush1.msra.mxu0 0.0
    %1865 = vmatprep.subr.mxu0 0.0
    %1866 = vmatpush1.msra.mxu0 0.0
    %1867 = vmatprep.subr.mxu0 0.0
    %1868 = vmatpush1.msra.mxu0 0.0
    %1869 = vmatprep.subr.mxu0 0.0
    %1870 = vmatpush1.msra.mxu0 0.0
    %1871 = vmatprep.subr.mxu0 0.0
    %1872 = vmatpush1.msra.mxu0 0.0
    %1873 = vmatprep.subr.mxu0 0.0
    %1874 = vmatpush1.msra.mxu0 0.0
    %1875 = vmatprep.subr.mxu0 0.0
    %1876 = vmatpush1.msra.mxu0 0.0
    %1877 = vmatprep.subr.mxu0 0.0
    %1878 = vmatpush1.msra.mxu0 0.0
    %1879 = vmatprep.subr.mxu0 0.0
    %1880 = vmatpush1.msra.mxu0 0.0
    %1881 = vmatprep.subr.mxu0 0.0
    %1882 = vmatpush1.msra.mxu0 0.0
    %1883 = vmatprep.subr.mxu0 0.0
    %1884 = vmatpush1.msra.mxu0 0.0
    %1885 = vmatprep.subr.mxu0 0.0
    %1886 = vmatpush1.msra.mxu0 0.0
    %1887 = vmatprep.subr.mxu0 0.0
    %1888 = vmatpush1.msra.mxu0 0.0
    %1889 = vmatprep.subr.mxu0 0.0
    %1890 = vmatpush1.msra.mxu0 0.0
    %1891 = vmatprep.subr.mxu0 0.0
    %1892 = vmatpush1.msra.mxu0 0.0
    %1893 = vmatprep.subr.mxu0 0.0
    %1894 = vmatpush1.msra.mxu0 0.0
    %1895 = vmatprep.subr.mxu0 0.0
    %1896 = vmatpush1.msra.mxu0 0.0
    %1897 = vmatprep.subr.mxu0 0.0
    %1898 = vmatpush1.msra.mxu0 0.0
    %1899 = vmatprep.subr.mxu0 0.0
    %1900 = vmatpush1.msra.mxu0 0.0
    %1901 = vmatprep.subr.mxu0 0.0
    %1902 = vmatpush1.msra.mxu0 0.0
    %1903 = vmatprep.subr.mxu0 0.0
    %1904 = vmatpush1.msra.mxu0 0.0
    %1905 = vmatprep.subr.mxu0 0.0
    %1906 = vmatpush1.msra.mxu0 0.0
    %1907 = vmatprep.subr.mxu0 0.0
    %1908 = vmatpush1.msra.mxu0 0.0
    %1909 = vmatprep.subr.mxu0 0.0
    %1910 = vmatpush1.msra.mxu0 0.0
    %1911 = vmatprep.subr.mxu0 0.0
    %1912 = vmatpush1.msra.mxu0 0.0
    %1913 = vmatprep.subr.mxu0 0.0
    %1914 = vmatpush1.msra.mxu0 0.0
    %1915 = vmatprep.mubr.f32.mxu0 0.0
    %1916 = vmatmul.mubr.f32.gmra.mrb[0].mxu0 %v1846
    %v1917 = vpop.f32.mrb[0].mxu0
    %v1918 = vadd.f32 %v1844, %v1917
    %v1919 = vpop.f32.mrb[0].mxu0
    %1920 = vmatprep.mubr.f32.mxu0 0.0
    %1921 = vmatmul.mubr.f32.gmra.mrb[0].mxu0 %v1849
    %v1922 = vpop.f32.mrb[0].mxu0
    %v1923 = vadd.f32 %v1844, %v1922
    %v1924 = vpop.f32.mrb[0].mxu0
    %1925 = vdwg.mxu0
    %v1926 = vmul.f32 %v1918, %v1918
    %v1927 = vmul.f32 %v1923, %v1923
    %v1928 = vmul.f32 %v1918, %v1926
    %v1929 = vmul.f32 %v1923, %v1927
    %v1930 = vmul.f32 %v1928, 0.044715
    %v1931 = vmul.f32 %v1929, 0.044715
    %v1932 = vadd.f32 %v1918, %v1930
    %v1933 = vadd.f32 %v1923, %v1931
    %v1934 = vmul.f32 %v1932, 0.7978846
    %v1935 = vmul.f32 %v1933, 0.7978846
    %v1936 = vtanh.pop %v1934
    %v1937 = vtanh.pop %v1935
    %v1938 = vadd.f32 %v1936, 1.0
    %v1939 = vadd.f32 %v1937, 1.0
    %v1940 = vmul.f32 %v1938, 0.5
    %v1941 = vmul.f32 %v1939, 0.5
    %v1942 = vmul.f32 %v1918, %v1940
    %v1943 = vmul.f32 %v1923, %v1941
    %v1944 = vlaneseq
    %v1945 = vshrl.u32 %v1944, 7
    %v1946 = vsub.s32 5, %v1945
    %v1947 = vrot.slane %v36, %v1946
    %vm1948 = vcmask 523264
    %v1950 = vsel %vm1948, %v1942, 0
    %v1953 = vsel %vm1948, %v1943, 0
    %1955 = vmatprep.subr.mxu0 0.0
    %1956 = vmatpush1.msra.mxu0 %v28
    %1957 = vmatprep.subr.mxu0 0.0
    %1958 = vmatpush1.msra.mxu0 %v29
    %1959 = vmatprep.subr.mxu0 0.0
    %1960 = vmatpush1.msra.mxu0 %v30
    %1961 = vmatprep.subr.mxu0 0.0
    %1962 = vmatpush1.msra.mxu0 %v31
    %1963 = vmatprep.subr.mxu0 0.0
    %1964 = vmatpush1.msra.mxu0 %v32
    %1965 = vmatprep.subr.mxu0 0.0
    %1966 = vmatpush1.msra.mxu0 %v33
    %1967 = vmatprep.subr.mxu0 0.0
    %1968 = vmatpush1.msra.mxu0 %v34
    %1969 = vmatprep.subr.mxu0 0.0
    %1970 = vmatpush1.msra.mxu0 %v35
    %1971 = vmatprep.subr.mxu0 0.0
    %1972 = vmatpush1.msra.mxu0 0.0
    %1973 = vmatprep.subr.mxu0 0.0
    %1974 = vmatpush1.msra.mxu0 0.0
    %1975 = vmatprep.subr.mxu0 0.0
    %1976 = vmatpush1.msra.mxu0 0.0
    %1977 = vmatprep.subr.mxu0 0.0
    %1978 = vmatpush1.msra.mxu0 0.0
    %1979 = vmatprep.subr.mxu0 0.0
    %1980 = vmatpush1.msra.mxu0 0.0
    %1981 = vmatprep.subr.mxu0 0.0
    %1982 = vmatpush1.msra.mxu0 0.0
    %1983 = vmatprep.subr.mxu0 0.0
    %1984 = vmatpush1.msra.mxu0 0.0
    %1985 = vmatprep.subr.mxu0 0.0
    %1986 = vmatpush1.msra.mxu0 0.0
    %1987 = vmatprep.subr.mxu0 0.0
    %1988 = vmatpush1.msra.mxu0 0.0
    %1989 = vmatprep.subr.mxu0 0.0
    %1990 = vmatpush1.msra.mxu0 0.0
    %1991 = vmatprep.subr.mxu0 0.0
    %1992 = vmatpush1.msra.mxu0 0.0
    %1993 = vmatprep.subr.mxu0 0.0
    %1994 = vmatpush1.msra.mxu0 0.0
    %1995 = vmatprep.subr.mxu0 0.0
    %1996 = vmatpush1.msra.mxu0 0.0
    %1997 = vmatprep.subr.mxu0 0.0
    %1998 = vmatpush1.msra.mxu0 0.0
    %1999 = vmatprep.subr.mxu0 0.0
    %2000 = vmatpush1.msra.mxu0 0.0
    %2001 = vmatprep.subr.mxu0 0.0
    %2002 = vmatpush1.msra.mxu0 0.0
    %2003 = vmatprep.subr.mxu0 0.0
    %2004 = vmatpush1.msra.mxu0 0.0
    %2005 = vmatprep.subr.mxu0 0.0
    %2006 = vmatpush1.msra.mxu0 0.0
    %2007 = vmatprep.subr.mxu0 0.0
    %2008 = vmatpush1.msra.mxu0 0.0
    %2009 = vmatprep.subr.mxu0 0.0
    %2010 = vmatpush1.msra.mxu0 0.0
    %2011 = vmatprep.subr.mxu0 0.0
    %2012 = vmatpush1.msra.mxu0 0.0
    %2013 = vmatprep.subr.mxu0 0.0
    %2014 = vmatpush1.msra.mxu0 0.0
    %2015 = vmatprep.subr.mxu0 0.0
    %2016 = vmatpush1.msra.mxu0 0.0
    %2017 = vmatprep.subr.mxu0 0.0
    %2018 = vmatpush1.msra.mxu0 0.0
    %2019 = vmatprep.mubr.f32.mxu0 0.0
    %2020 = vmatmul.mubr.f32.gmra.mrb[0].mxu0 %v1950
    %v2021 = vpop.f32.mrb[0].mxu0
    %v2022 = vadd.f32 %v1947, %v2021
    %v2023 = vpop.f32.mrb[0].mxu0
    %2024 = vmatprep.mubr.f32.mxu0 0.0
    %2025 = vmatmul.mubr.f32.gmra.mrb[0].mxu0 %v1953
    %v2026 = vpop.f32.mrb[0].mxu0
    %v2027 = vadd.f32 %v1947, %v2026
    %v2028 = vpop.f32.mrb[0].mxu0
    %2029 = vdwg.mxu0
    %v2030 = vadd.f32 %v2022, %v1839
    %v2031 = vadd.f32 %v2027, %v1840
    %v2032 = vsel %vm41, %v2030, 0.0
    %2033 = vadd.xlane.f32.xlu0 %v2032
    %v2034 = vpop.xlane.xlu0 %2033
    %v2035 = vsel %vm41, %v2031, 0.0
    %2036 = vadd.xlane.f32.xlu0 %v2035
    %v2037 = vpop.xlane.xlu0 %2036
    %v2038 = vmul.f32 %v2034, %v1808
    %v2039 = vmul.f32 %v2037, %v1808
    %v2040 = vsub.f32 %v2030, %v2038
    %v2041 = vsub.f32 %v2031, %v2039
    %v2042 = vmul.f32 %v2040, %v2040
    %v2043 = vmul.f32 %v2041, %v2041
    %v2044 = vsel %vm41, %v2042, 0.0
    %2045 = vadd.xlane.f32.xlu0 %v2044
    %v2046 = vpop.xlane.xlu0 %2045
    %v2047 = vsel %vm41, %v2043, 0.0
    %2048 = vadd.xlane.f32.xlu0 %v2047
    %v2049 = vpop.xlane.xlu0 %2048
    %v2050 = vmul.f32 %v2046, %v1808
    %v2051 = vmul.f32 %v2049, %v1808
    %v2052 = vadd.f32 %v2050, 1e-06
    %v2053 = vadd.f32 %v2051, 1e-06
    %v2054 = vrsqrt.pop %v2052
    %v2055 = vrsqrt.pop %v2053
    %v2056 = vmul.f32 %v2040, %v2054
    %v2057 = vmul.f32 %v2041, %v2055
    %v2058 = vlaneseq
    %v2059 = vshrl.u32 %v2058, 7
    %v2060 = vsub.s32 6, %v2059
    %v2061 = vrot.slane %v36, %v2060
    %v2062 = vmul.f32 %v2056, %v2061
    %v2063 = vmul.f32 %v2057, %v2061
    %v2064 = vlaneseq
    %v2065 = vshrl.u32 %v2064, 7
    %v2066 = vsub.s32 7, %v2065
    %v2067 = vrot.slane %v36, %v2066
    %v2068 = vadd.f32 %v2062, %v2067
    %v2069 = vadd.f32 %v2063, %v2067
    %2070 = vst.msk [vmem:[#allocation2] sm:$0xff] %vm41, %v2068
    %2071 = vst.msk [vmem:[#allocation2 + $0x8] sm:$0xff] %vm41, %v2069
    // Predicated region
    $region18: #{tpu_custom_call.1} parent=1 // pred_check
      _
    $region19: #{tpu_custom_call.1} parent=1 // pred_check_branch
      %2073 = sbr.rel (0) target = $region21
    $region20: #{tpu_custom_call.1} parent=1 // pred_region
      %s2075 = ssub.s32 256, 256
      %2076 = vsyncadd [#allocation3], %s2075
      %s2077 = sshll.u32 [#allocation2], 4
      %s2078 = int_to_ptr.vmem [resolvable:$true] %s2077
      %2083 = dma.vmem_to_hbm [thread:$0]  %s2078, 256, %s4, [#allocation3], 128, 128, 8
    $region21: #{tpu_custom_call.1} parent=1 // pred_fallthru
      _
    // Predicated region
    $region22: #{tpu_custom_call.1} parent=1 // pred_check
      _
    $region23: #{tpu_custom_call.1} parent=1 // pred_check_branch
      %2085 = sbr.rel (0) target = $region25
    $region24: #{tpu_custom_call.1} parent=1 // pred_region
      %2086 = dma.done [#allocation3], 256
    $region25: #{tpu_custom_call.1} parent=1 // pred_fallthru
      _
    %2087 = vsyncpa [#allocation3], 1

</llo_original>
